<compile_context>
chip_gen: v6e
topology: v6e:2x2x1
jax: 0.10.0
libtpu: 0.0.40
codegen_flags: <defaults>
</compile_context>

<pallas_src>
import jax
import jax.numpy as jnp
from jax.experimental import pallas as pl
from jax.experimental.pallas import tpu as pltpu

# ---------------- model hyper-parameters (small, consistent with module) ----
DIM = 32          # model dim
DEPTH = 2         # number of (attn, ff) layers
HEADS = 2
DIM_HEAD = 16
MLP_DIM = 64
SEQ = 8           # tokens per batch element
INNER = HEADS * DIM_HEAD        # 32
SCALE = DIM_HEAD ** (-0.5)
LN_EPS = 1e-5


# ---------------------------------------------------------------------------
# Fused transformer kernel: runs all DEPTH layers for `rows` tokens
# (rows = SEQ on the per-batch v7x path, rows = B*SEQ on the single-step path).
# ---------------------------------------------------------------------------
def _layernorm(x, g, b):
    # x: (rows, D) f32, g/b: (1, D) f32
    mean = jnp.mean(x, axis=-1, keepdims=True)
    cent = x - mean
    var = jnp.mean(cent * cent, axis=-1, keepdims=True)
    return cent * jax.lax.rsqrt(var + LN_EPS) * g + b


def transformer_kernel(x_ref,
                       ln1_g_ref, ln1_b_ref, wqkv_ref, wo_ref,
                       ln2_g_ref, ln2_b_ref, w1_ref, b1_ref, w2_ref, b2_ref,
                       o_ref):
    x = x_ref[...].astype(jnp.float32)                    # (rows, D)
    rows = x.shape[0]
    nb = rows // SEQ                                       # batch elems here

    for l in range(DEPTH):                                 # static (DEPTH=2)
        # ------------- attention sub-block (pre-norm, residual) ------------
        xn = _layernorm(x, ln1_g_ref[l], ln1_b_ref[l])     # (rows, D)

        # ONE fused QKV projection for all rows / heads: (rows,32)@(32,96).
        qkv = jnp.dot(xn, wqkv_ref[l],
                      preferred_element_type=jnp.float32)  # (rows, 3*INNER)

        per_batch = []
        for b in range(nb):                                # static unroll
            r0 = b * SEQ
            head_outs = []
            for h in range(HEADS):                         # static unroll
                c = h * DIM_HEAD
                q = qkv[r0:r0 + SEQ, c:c + DIM_HEAD]                    # (S,d)
                k = qkv[r0:r0 + SEQ, INNER + c:INNER + c + DIM_HEAD]    # (S,d)
                v = qkv[r0:r0 + SEQ, 2 * INNER + c:2 * INNER + c + DIM_HEAD]

                # scores = q k^T * scale  (contract over dim_head)
                dots = jax.lax.dot_general(
                    q, k, (((1,), (1,)), ((), ())),
                    preferred_element_type=jnp.float32) * SCALE          # (S,S)

                # numerically-stable softmax; approx reciprocal -> EUP slot
                m = jnp.max(dots, axis=-1, keepdims=True)
                e = jnp.exp(dots - m)
                p = e * pl.reciprocal(jnp.sum(e, axis=-1, keepdims=True),
                                      approx=True)

                head_outs.append(
                    jnp.dot(p, v, preferred_element_type=jnp.float32))  # (S,d)
            # heads contiguous along lanes -> single W_out matmul later
            per_batch.append(jnp.concatenate(head_outs, axis=-1))       # (S,INNER)

        hv = per_batch[0] if nb == 1 else jnp.concatenate(per_batch, axis=0)
        # ONE output projection for all rows / heads: (rows,32)@(32,32).
        x = x + jnp.dot(hv, wo_ref[l], preferred_element_type=jnp.float32)

        # ------------- feed-forward sub-block (pre-norm, residual) ---------
        xn = _layernorm(x, ln2_g_ref[l], ln2_b_ref[l])
        hid = jnp.dot(xn, w1_ref[l],
                      preferred_element_type=jnp.float32) + b1_ref[l]
        # exact GELU (erf-based, matches torch.nn.GELU default).
        # TODO(synk): jax.nn.gelu(approximate=True) would route to the EUP if
        # the VALU ever becomes the binding slot (changes numerics vs torch).
        hid = 0.5 * hid * (1.0 + jax.lax.erf(hid * 0.7071067811865476))
        x = x + jnp.dot(hid, w2_ref[l],
                        preferred_element_type=jnp.float32) + b2_ref[l]

    o_ref[...] = x.astype(o_ref.dtype)


# ---------------------------------------------------------------------------
# pallas_call wrapper: one call for the whole encoder; grid chosen per chip.
# ---------------------------------------------------------------------------
PARAM_ORDER = ("ln1_g", "ln1_b", "wqkv", "wo",
               "ln2_g", "ln2_b", "w1", "b1", "w2", "b2")


def _resident_spec(a):
    # Full-array block, same (all-zero) block index every grid step -> weights
    # stay resident in VMEM across steps.
    nd = a.ndim
    return pl.BlockSpec(a.shape, lambda b, _nd=nd: (0,) * _nd)


def _num_tensorcores_per_chip():
    try:
        kind = jax.devices()[0].device_kind.lower()
    except Exception:
        return 1
    return 2 if "v7" in kind else 1      # v7x: 2 TCs/chip; v5e/v6e: 1


def transformer_forward(x, stacked):
    B, N, D = x.shape
    assert N == SEQ and D == DIM
    xf = x.reshape(B * N, D)                       # contiguous token slab
    flat = [stacked[k] for k in PARAM_ORDER]

    if _num_tensorcores_per_chip() > 1 and B > 1:
        # v7x: one batch element per TensorCore via a parallel 2-step grid.
        grid, rows, sem = (B,), N, ("parallel",)
    else:
        # v5e / v6e: single grid step, all rows processed in one invocation.
        grid, rows, sem = (1,), B * N, ("arbitrary",)

    out = pl.pallas_call(
        transformer_kernel,
        out_shape=jax.ShapeDtypeStruct((B * N, D), x.dtype),
        grid_spec=pltpu.PrefetchScalarGridSpec(
            num_scalar_prefetch=0,
            grid=grid,
            in_specs=[pl.BlockSpec((rows, D), lambda b: (b, 0))]
                     + [_resident_spec(a) for a in flat],
            out_specs=pl.BlockSpec((rows, D), lambda b: (b, 0)),
        ),
        compiler_params=pltpu.CompilerParams(dimension_semantics=sem),
    )(xf, *flat)
    return out.reshape(B, N, D)


transformer_forward_jit = jax.jit(transformer_forward)


# ---------------------------------------------------------------------------
# Host-side packing: stack per-layer parameters (trace-time layout plumbing).
# Column order of wqkv is (qkv-chunk, head, dim_head) and row order of wout is
# (head, dim_head) — the natural torch nn.Linear layout — so the kernel's lane
# slices / lane concat reproduce the reference exactly.
# ---------------------------------------------------------------------------
def pack_params(params):
    acc = {k: [] for k in PARAM_ORDER}
    for layer in params:
        a, f = layer["attn"], layer["ff"]
        acc["ln1_g"].append(a["gamma"][None, :])            # (1, D)
        acc["ln1_b"].append(a["beta"][None, :])
        acc["wqkv"].append(a["wqkv"])                        # (D, 3*INNER)
        acc["wo"].append(a["wout"])                          # (INNER, D)
        acc["ln2_g"].append(f["gamma"][None, :])
        acc["ln2_b"].append(f["beta"][None, :])
        acc["w1"].append(f["w1"])                            # (D, MLP)
        acc["b1"].append(f["b1"][None, :])                   # (1, MLP)
        acc["w2"].append(f["w2"])                            # (MLP, D)
        acc["b2"].append(f["b2"][None, :])                   # (1, D)
    return {k: jnp.stack(v, axis=0) for k, v in acc.items()}


# ---------------------------------------------------------------------------
# Pure-JAX reference (uses the original combined wqkv/wout layout).
# ---------------------------------------------------------------------------
def _ln_ref(x, g, b):
    mu = jnp.mean(x, axis=-1, keepdims=True)
    var = jnp.mean((x - mu) ** 2, axis=-1, keepdims=True)
    return (x - mu) * jax.lax.rsqrt(var + LN_EPS) * g + b


def transformer_ref(x, params):
    B, N, D = x.shape
    for layer in params:
        a, f = layer["attn"], layer["ff"]
        xn = _ln_ref(x, a["gamma"], a["beta"])
        qkv = xn @ a["wqkv"]
        q, k, v = jnp.split(qkv, 3, axis=-1)

        def split_heads(t):
            return t.reshape(B, N, HEADS, DIM_HEAD).transpose(0, 2, 1, 3)

        q, k, v = map(split_heads, (q, k, v))
        dots = jnp.einsum("bhnd,bhmd->bhnm", q, k) * SCALE
        attn = jax.nn.softmax(dots, axis=-1)
        out = jnp.einsum("bhnm,bhmd->bhnd", attn, v)
        out = out.transpose(0, 2, 1, 3).reshape(B, N, INNER)
        x = out @ a["wout"] + x

        xn = _ln_ref(x, f["gamma"], f["beta"])
        h = xn @ f["w1"] + f["b1"]
        h = 0.5 * h * (1.0 + jax.lax.erf(h * 0.7071067811865476))
        x = h @ f["w2"] + f["b2"] + x
    return x


# ---------------------------------------------------------------------------
def init_params(key):
    params = []
    for _ in range(DEPTH):
        key, *ks = jax.random.split(key, 7)
        attn = {
            "gamma": jnp.ones((DIM,), jnp.float32),
            "beta": jnp.zeros((DIM,), jnp.float32),
            # stored as (in, out): y = x @ W   (matches nn.Linear y = x W^T)
            "wqkv": 0.05 * jax.random.normal(ks[0], (DIM, 3 * INNER), jnp.float32),
            "wout": 0.05 * jax.random.normal(ks[1], (INNER, DIM), jnp.float32),
        }
        ff = {
            "gamma": jnp.ones((DIM,), jnp.float32),
            "beta": jnp.zeros((DIM,), jnp.float32),
            "w1": 0.05 * jax.random.normal(ks[2], (DIM, MLP_DIM), jnp.float32),
            "b1": 0.05 * jax.random.normal(ks[3], (MLP_DIM,), jnp.float32),
            "w2": 0.05 * jax.random.normal(ks[4], (MLP_DIM, DIM), jnp.float32),
            "b2": 0.05 * jax.random.normal(ks[5], (DIM,), jnp.float32),
        }
        params.append({"attn": attn, "ff": ff})
    return params


# TODO(synk): patch embedding, sincos pos-emb, the 1-layer decoder stack and
# the final Linear + pixel rearrange of SimpleViT are host-side data plumbing
# around this Transformer core and are not implemented as kernels here.

if __name__ == "__main__":
    B, N = 2, SEQ
    key = jax.random.PRNGKey(0)
    key, xkey = jax.random.split(key)
    x = jax.random.normal(xkey, (B, N, DIM), jnp.float32)
    params = init_params(key)
    stacked = pack_params(params)

    out = transformer_forward_jit(x, stacked)
    out = jax.block_until_ready(out)

    ref = transformer_ref(x, params)
    assert out.shape == (B, N, DIM)
    # tolerance relaxed vs. 1e-4 because the softmax denominator uses the
    # EUP approximate reciprocal (review-acknowledged); still tight in f32.
    max_err = jnp.max(jnp.abs(out - ref))
    assert jnp.allclose(out, ref, atol=2e-3, rtol=2e-3), f"max abs err {max_err}"

    print("KERNEL_OK")
</pallas_src>

<mosaic_0001>
module attributes {stable_mosaic.version = 11 : i64} {
  func.func @transformer_kernel(%arg0: i32, %arg1: memref<16x32xf32, #tpu.memory_space<vmem>>, %arg2: memref<2x1x32xf32, #tpu.memory_space<vmem>>, %arg3: memref<2x1x32xf32, #tpu.memory_space<vmem>>, %arg4: memref<2x32x96xf32, #tpu.memory_space<vmem>>, %arg5: memref<2x32x32xf32, #tpu.memory_space<vmem>>, %arg6: memref<2x1x32xf32, #tpu.memory_space<vmem>>, %arg7: memref<2x1x32xf32, #tpu.memory_space<vmem>>, %arg8: memref<2x32x64xf32, #tpu.memory_space<vmem>>, %arg9: memref<2x1x64xf32, #tpu.memory_space<vmem>>, %arg10: memref<2x64x32xf32, #tpu.memory_space<vmem>>, %arg11: memref<2x1x32xf32, #tpu.memory_space<vmem>>, %arg12: memref<16x32xf32, #tpu.memory_space<vmem>>) attributes {dimension_semantics = [#tpu.dimension_semantics<arbitrary>], iteration_bounds = array<i64: 1>, scalar_prefetch = 0 : i64, scratch_operands = 0 : i64, tpu.core_type = #tpu.core_type<tc>, window_params = [{transform_indices = @transform_0, window_bounds = array<i64: 16, 32>}, {pipeline_mode = #tpu.pipeline_mode<synchronous>, transform_indices = @transform_1, window_bounds = array<i64: 2, 1, 32>}, {pipeline_mode = #tpu.pipeline_mode<synchronous>, transform_indices = @transform_2, window_bounds = array<i64: 2, 1, 32>}, {pipeline_mode = #tpu.pipeline_mode<synchronous>, transform_indices = @transform_3, window_bounds = array<i64: 2, 32, 96>}, {pipeline_mode = #tpu.pipeline_mode<synchronous>, transform_indices = @transform_4, window_bounds = array<i64: 2, 32, 32>}, {pipeline_mode = #tpu.pipeline_mode<synchronous>, transform_indices = @transform_5, window_bounds = array<i64: 2, 1, 32>}, {pipeline_mode = #tpu.pipeline_mode<synchronous>, transform_indices = @transform_6, window_bounds = array<i64: 2, 1, 32>}, {pipeline_mode = #tpu.pipeline_mode<synchronous>, transform_indices = @transform_7, window_bounds = array<i64: 2, 32, 64>}, {pipeline_mode = #tpu.pipeline_mode<synchronous>, transform_indices = @transform_8, window_bounds = array<i64: 2, 1, 64>}, {pipeline_mode = #tpu.pipeline_mode<synchronous>, transform_indices = @transform_9, window_bounds = array<i64: 2, 64, 32>}, {pipeline_mode = #tpu.pipeline_mode<synchronous>, transform_indices = @transform_10, window_bounds = array<i64: 2, 1, 32>}, {transform_indices = @transform_11, window_bounds = array<i64: 16, 32>}]} {
    %c0 = arith.constant 0 : index
    %c0_0 = arith.constant 0 : index
    %0 = vector.load %arg1[%c0, %c0_0] : memref<16x32xf32, #tpu.memory_space<vmem>>, vector<16x32xf32>
    %c0_1 = arith.constant 0 : index
    %c0_2 = arith.constant 0 : index
    %c0_3 = arith.constant 0 : index
    %1 = vector.load %arg2[%c0_1, %c0_2, %c0_3] : memref<2x1x32xf32, #tpu.memory_space<vmem>>, vector<1x1x32xf32>
    %2 = vector.shape_cast %1 : vector<1x1x32xf32> to vector<1x32xf32>
    %c0_4 = arith.constant 0 : index
    %c0_5 = arith.constant 0 : index
    %c0_6 = arith.constant 0 : index
    %3 = vector.load %arg3[%c0_4, %c0_5, %c0_6] : memref<2x1x32xf32, #tpu.memory_space<vmem>>, vector<1x1x32xf32>
    %4 = vector.shape_cast %3 : vector<1x1x32xf32> to vector<1x32xf32>
    %cst = arith.constant dense<0.000000e+00> : vector<16xf32>
    %5 = vector.multi_reduction <add>, %0, %cst [1] : vector<16x32xf32> to vector<16xf32>
    %6 = vector.shape_cast %5 : vector<16xf32> to vector<16x1xf32>
    %cst_7 = arith.constant 3.200000e+01 : f32
    %7 = vector.broadcast %cst_7 : f32 to vector<16x1xf32>
    %8 = arith.divf %6, %7 : vector<16x1xf32>
    %9 = vector.broadcast %8 : vector<16x1xf32> to vector<16x32xf32>
    %10 = arith.subf %0, %9 : vector<16x32xf32>
    %11 = arith.mulf %10, %10 : vector<16x32xf32>
    %cst_8 = arith.constant dense<0.000000e+00> : vector<16xf32>
    %12 = vector.multi_reduction <add>, %11, %cst_8 [1] : vector<16x32xf32> to vector<16xf32>
    %13 = vector.shape_cast %12 : vector<16xf32> to vector<16x1xf32>
    %cst_9 = arith.constant 3.200000e+01 : f32
    %14 = vector.broadcast %cst_9 : f32 to vector<16x1xf32>
    %15 = arith.divf %13, %14 : vector<16x1xf32>
    %cst_10 = arith.constant 9.99999974E-6 : f32
    %16 = vector.broadcast %cst_10 : f32 to vector<16x1xf32>
    %17 = arith.addf %15, %16 : vector<16x1xf32>
    %18 = math.rsqrt %17 : vector<16x1xf32>
    %19 = vector.broadcast %18 : vector<16x1xf32> to vector<16x32xf32>
    %20 = arith.mulf %10, %19 : vector<16x32xf32>
    %21 = vector.broadcast %2 : vector<1x32xf32> to vector<16x32xf32>
    %22 = arith.mulf %20, %21 : vector<16x32xf32>
    %23 = vector.broadcast %4 : vector<1x32xf32> to vector<16x32xf32>
    %24 = arith.addf %22, %23 : vector<16x32xf32>
    %c0_11 = arith.constant 0 : index
    %c0_12 = arith.constant 0 : index
    %c0_13 = arith.constant 0 : index
    %25 = vector.load %arg4[%c0_11, %c0_12, %c0_13] : memref<2x32x96xf32, #tpu.memory_space<vmem>>, vector<1x32x96xf32>
    %26 = vector.shape_cast %25 : vector<1x32x96xf32> to vector<32x96xf32>
    %cst_14 = arith.constant dense<0.000000e+00> : vector<16x96xf32>
    %27 = tpu.matmul %24, %26, %cst_14 {dimension_numbers = #tpu.dot_dimension_numbers<[1], [0], [0], [1], [0, 0, 1, 1], [], []>} : vector<16x32xf32>, vector<32x96xf32>, vector<16x96xf32> -> vector<16x96xf32>
    %28 = vector.extract_strided_slice %27 {offsets = [0, 0], sizes = [8, 16], strides = [1, 1]} : vector<16x96xf32> to vector<8x16xf32>
    %29 = vector.extract_strided_slice %27 {offsets = [0, 32], sizes = [8, 16], strides = [1, 1]} : vector<16x96xf32> to vector<8x16xf32>
    %30 = vector.extract_strided_slice %27 {offsets = [0, 64], sizes = [8, 16], strides = [1, 1]} : vector<16x96xf32> to vector<8x16xf32>
    %cst_15 = arith.constant dense<0.000000e+00> : vector<8x8xf32>
    %31 = tpu.matmul %28, %29, %cst_15 {dimension_numbers = #tpu.dot_dimension_numbers<[1], [1], [0], [0], [0, 0, 1, 0], [], []>} : vector<8x16xf32>, vector<8x16xf32>, vector<8x8xf32> -> vector<8x8xf32>
    %cst_16 = arith.constant 2.500000e-01 : f32
    %32 = vector.broadcast %cst_16 : f32 to vector<8x8xf32>
    %33 = arith.mulf %31, %32 : vector<8x8xf32>
    %cst_17 = arith.constant dense<0xFF800000> : vector<8xf32>
    %34 = vector.multi_reduction <maximumf>, %33, %cst_17 [1] : vector<8x8xf32> to vector<8xf32>
    %35 = vector.shape_cast %34 : vector<8xf32> to vector<8x1xf32>
    %36 = vector.broadcast %35 : vector<8x1xf32> to vector<8x8xf32>
    %37 = arith.subf %33, %36 : vector<8x8xf32>
    %38 = math.exp %37 : vector<8x8xf32>
    %cst_18 = arith.constant dense<0.000000e+00> : vector<8xf32>
    %39 = vector.multi_reduction <add>, %38, %cst_18 [1] : vector<8x8xf32> to vector<8xf32>
    %40 = vector.shape_cast %39 : vector<8xf32> to vector<8x1xf32>
    %41 = tpu.reciprocal %40 {approx = true} : vector<8x1xf32> -> vector<8x1xf32>
    %42 = vector.broadcast %41 : vector<8x1xf32> to vector<8x8xf32>
    %43 = arith.mulf %38, %42 : vector<8x8xf32>
    %cst_19 = arith.constant dense<0.000000e+00> : vector<8x16xf32>
    %44 = tpu.matmul %43, %30, %cst_19 {dimension_numbers = #tpu.dot_dimension_numbers<[1], [0], [0], [1], [0, 0, 1, 1], [], []>} : vector<8x8xf32>, vector<8x16xf32>, vector<8x16xf32> -> vector<8x16xf32>
    %45 = vector.extract_strided_slice %27 {offsets = [0, 16], sizes = [8, 16], strides = [1, 1]} : vector<16x96xf32> to vector<8x16xf32>
    %46 = vector.extract_strided_slice %27 {offsets = [0, 48], sizes = [8, 16], strides = [1, 1]} : vector<16x96xf32> to vector<8x16xf32>
    %47 = vector.extract_strided_slice %27 {offsets = [0, 80], sizes = [8, 16], strides = [1, 1]} : vector<16x96xf32> to vector<8x16xf32>
    %cst_20 = arith.constant dense<0.000000e+00> : vector<8x8xf32>
    %48 = tpu.matmul %45, %46, %cst_20 {dimension_numbers = #tpu.dot_dimension_numbers<[1], [1], [0], [0], [0, 0, 1, 0], [], []>} : vector<8x16xf32>, vector<8x16xf32>, vector<8x8xf32> -> vector<8x8xf32>
    %cst_21 = arith.constant 2.500000e-01 : f32
    %49 = vector.broadcast %cst_21 : f32 to vector<8x8xf32>
    %50 = arith.mulf %48, %49 : vector<8x8xf32>
    %cst_22 = arith.constant dense<0xFF800000> : vector<8xf32>
    %51 = vector.multi_reduction <maximumf>, %50, %cst_22 [1] : vector<8x8xf32> to vector<8xf32>
    %52 = vector.shape_cast %51 : vector<8xf32> to vector<8x1xf32>
    %53 = vector.broadcast %52 : vector<8x1xf32> to vector<8x8xf32>
    %54 = arith.subf %50, %53 : vector<8x8xf32>
    %55 = math.exp %54 : vector<8x8xf32>
    %cst_23 = arith.constant dense<0.000000e+00> : vector<8xf32>
    %56 = vector.multi_reduction <add>, %55, %cst_23 [1] : vector<8x8xf32> to vector<8xf32>
    %57 = vector.shape_cast %56 : vector<8xf32> to vector<8x1xf32>
    %58 = tpu.reciprocal %57 {approx = true} : vector<8x1xf32> -> vector<8x1xf32>
    %59 = vector.broadcast %58 : vector<8x1xf32> to vector<8x8xf32>
    %60 = arith.mulf %55, %59 : vector<8x8xf32>
    %cst_24 = arith.constant dense<0.000000e+00> : vector<8x16xf32>
    %61 = tpu.matmul %60, %47, %cst_24 {dimension_numbers = #tpu.dot_dimension_numbers<[1], [0], [0], [1], [0, 0, 1, 1], [], []>} : vector<8x8xf32>, vector<8x16xf32>, vector<8x16xf32> -> vector<8x16xf32>
    %62 = tpu.concatenate %44, %61 in 1 : vector<8x16xf32>, vector<8x16xf32> -> vector<8x32xf32>
    %63 = vector.extract_strided_slice %27 {offsets = [8, 0], sizes = [8, 16], strides = [1, 1]} : vector<16x96xf32> to vector<8x16xf32>
    %64 = vector.extract_strided_slice %27 {offsets = [8, 32], sizes = [8, 16], strides = [1, 1]} : vector<16x96xf32> to vector<8x16xf32>
    %65 = vector.extract_strided_slice %27 {offsets = [8, 64], sizes = [8, 16], strides = [1, 1]} : vector<16x96xf32> to vector<8x16xf32>
    %cst_25 = arith.constant dense<0.000000e+00> : vector<8x8xf32>
    %66 = tpu.matmul %63, %64, %cst_25 {dimension_numbers = #tpu.dot_dimension_numbers<[1], [1], [0], [0], [0, 0, 1, 0], [], []>} : vector<8x16xf32>, vector<8x16xf32>, vector<8x8xf32> -> vector<8x8xf32>
    %cst_26 = arith.constant 2.500000e-01 : f32
    %67 = vector.broadcast %cst_26 : f32 to vector<8x8xf32>
    %68 = arith.mulf %66, %67 : vector<8x8xf32>
    %cst_27 = arith.constant dense<0xFF800000> : vector<8xf32>
    %69 = vector.multi_reduction <maximumf>, %68, %cst_27 [1] : vector<8x8xf32> to vector<8xf32>
    %70 = vector.shape_cast %69 : vector<8xf32> to vector<8x1xf32>
    %71 = vector.broadcast %70 : vector<8x1xf32> to vector<8x8xf32>
    %72 = arith.subf %68, %71 : vector<8x8xf32>
    %73 = math.exp %72 : vector<8x8xf32>
    %cst_28 = arith.constant dense<0.000000e+00> : vector<8xf32>
    %74 = vector.multi_reduction <add>, %73, %cst_28 [1] : vector<8x8xf32> to vector<8xf32>
    %75 = vector.shape_cast %74 : vector<8xf32> to vector<8x1xf32>
    %76 = tpu.reciprocal %75 {approx = true} : vector<8x1xf32> -> vector<8x1xf32>
    %77 = vector.broadcast %76 : vector<8x1xf32> to vector<8x8xf32>
    %78 = arith.mulf %73, %77 : vector<8x8xf32>
    %cst_29 = arith.constant dense<0.000000e+00> : vector<8x16xf32>
    %79 = tpu.matmul %78, %65, %cst_29 {dimension_numbers = #tpu.dot_dimension_numbers<[1], [0], [0], [1], [0, 0, 1, 1], [], []>} : vector<8x8xf32>, vector<8x16xf32>, vector<8x16xf32> -> vector<8x16xf32>
    %80 = vector.extract_strided_slice %27 {offsets = [8, 16], sizes = [8, 16], strides = [1, 1]} : vector<16x96xf32> to vector<8x16xf32>
    %81 = vector.extract_strided_slice %27 {offsets = [8, 48], sizes = [8, 16], strides = [1, 1]} : vector<16x96xf32> to vector<8x16xf32>
    %82 = vector.extract_strided_slice %27 {offsets = [8, 80], sizes = [8, 16], strides = [1, 1]} : vector<16x96xf32> to vector<8x16xf32>
    %cst_30 = arith.constant dense<0.000000e+00> : vector<8x8xf32>
    %83 = tpu.matmul %80, %81, %cst_30 {dimension_numbers = #tpu.dot_dimension_numbers<[1], [1], [0], [0], [0, 0, 1, 0], [], []>} : vector<8x16xf32>, vector<8x16xf32>, vector<8x8xf32> -> vector<8x8xf32>
    %cst_31 = arith.constant 2.500000e-01 : f32
    %84 = vector.broadcast %cst_31 : f32 to vector<8x8xf32>
    %85 = arith.mulf %83, %84 : vector<8x8xf32>
    %cst_32 = arith.constant dense<0xFF800000> : vector<8xf32>
    %86 = vector.multi_reduction <maximumf>, %85, %cst_32 [1] : vector<8x8xf32> to vector<8xf32>
    %87 = vector.shape_cast %86 : vector<8xf32> to vector<8x1xf32>
    %88 = vector.broadcast %87 : vector<8x1xf32> to vector<8x8xf32>
    %89 = arith.subf %85, %88 : vector<8x8xf32>
    %90 = math.exp %89 : vector<8x8xf32>
    %cst_33 = arith.constant dense<0.000000e+00> : vector<8xf32>
    %91 = vector.multi_reduction <add>, %90, %cst_33 [1] : vector<8x8xf32> to vector<8xf32>
    %92 = vector.shape_cast %91 : vector<8xf32> to vector<8x1xf32>
    %93 = tpu.reciprocal %92 {approx = true} : vector<8x1xf32> -> vector<8x1xf32>
    %94 = vector.broadcast %93 : vector<8x1xf32> to vector<8x8xf32>
    %95 = arith.mulf %90, %94 : vector<8x8xf32>
    %cst_34 = arith.constant dense<0.000000e+00> : vector<8x16xf32>
    %96 = tpu.matmul %95, %82, %cst_34 {dimension_numbers = #tpu.dot_dimension_numbers<[1], [0], [0], [1], [0, 0, 1, 1], [], []>} : vector<8x8xf32>, vector<8x16xf32>, vector<8x16xf32> -> vector<8x16xf32>
    %97 = tpu.concatenate %79, %96 in 1 : vector<8x16xf32>, vector<8x16xf32> -> vector<8x32xf32>
    %98 = tpu.concatenate %62, %97 in 0 : vector<8x32xf32>, vector<8x32xf32> -> vector<16x32xf32>
    %c0_35 = arith.constant 0 : index
    %c0_36 = arith.constant 0 : index
    %c0_37 = arith.constant 0 : index
    %99 = vector.load %arg5[%c0_35, %c0_36, %c0_37] : memref<2x32x32xf32, #tpu.memory_space<vmem>>, vector<1x32x32xf32>
    %100 = vector.shape_cast %99 : vector<1x32x32xf32> to vector<32x32xf32>
    %cst_38 = arith.constant dense<0.000000e+00> : vector<16x32xf32>
    %101 = tpu.matmul %98, %100, %cst_38 {dimension_numbers = #tpu.dot_dimension_numbers<[1], [0], [0], [1], [0, 0, 1, 1], [], []>} : vector<16x32xf32>, vector<32x32xf32>, vector<16x32xf32> -> vector<16x32xf32>
    %102 = arith.addf %0, %101 : vector<16x32xf32>
    %c0_39 = arith.constant 0 : index
    %c0_40 = arith.constant 0 : index
    %c0_41 = arith.constant 0 : index
    %103 = vector.load %arg6[%c0_39, %c0_40, %c0_41] : memref<2x1x32xf32, #tpu.memory_space<vmem>>, vector<1x1x32xf32>
    %104 = vector.shape_cast %103 : vector<1x1x32xf32> to vector<1x32xf32>
    %c0_42 = arith.constant 0 : index
    %c0_43 = arith.constant 0 : index
    %c0_44 = arith.constant 0 : index
    %105 = vector.load %arg7[%c0_42, %c0_43, %c0_44] : memref<2x1x32xf32, #tpu.memory_space<vmem>>, vector<1x1x32xf32>
    %106 = vector.shape_cast %105 : vector<1x1x32xf32> to vector<1x32xf32>
    %cst_45 = arith.constant dense<0.000000e+00> : vector<16xf32>
    %107 = vector.multi_reduction <add>, %102, %cst_45 [1] : vector<16x32xf32> to vector<16xf32>
    %108 = vector.shape_cast %107 : vector<16xf32> to vector<16x1xf32>
    %cst_46 = arith.constant 3.200000e+01 : f32
    %109 = vector.broadcast %cst_46 : f32 to vector<16x1xf32>
    %110 = arith.divf %108, %109 : vector<16x1xf32>
    %111 = vector.broadcast %110 : vector<16x1xf32> to vector<16x32xf32>
    %112 = arith.subf %102, %111 : vector<16x32xf32>
    %113 = arith.mulf %112, %112 : vector<16x32xf32>
    %cst_47 = arith.constant dense<0.000000e+00> : vector<16xf32>
    %114 = vector.multi_reduction <add>, %113, %cst_47 [1] : vector<16x32xf32> to vector<16xf32>
    %115 = vector.shape_cast %114 : vector<16xf32> to vector<16x1xf32>
    %cst_48 = arith.constant 3.200000e+01 : f32
    %116 = vector.broadcast %cst_48 : f32 to vector<16x1xf32>
    %117 = arith.divf %115, %116 : vector<16x1xf32>
    %cst_49 = arith.constant 9.99999974E-6 : f32
    %118 = vector.broadcast %cst_49 : f32 to vector<16x1xf32>
    %119 = arith.addf %117, %118 : vector<16x1xf32>
    %120 = math.rsqrt %119 : vector<16x1xf32>
    %121 = vector.broadcast %120 : vector<16x1xf32> to vector<16x32xf32>
    %122 = arith.mulf %112, %121 : vector<16x32xf32>
    %123 = vector.broadcast %104 : vector<1x32xf32> to vector<16x32xf32>
    %124 = arith.mulf %122, %123 : vector<16x32xf32>
    %125 = vector.broadcast %106 : vector<1x32xf32> to vector<16x32xf32>
    %126 = arith.addf %124, %125 : vector<16x32xf32>
    %c0_50 = arith.constant 0 : index
    %c0_51 = arith.constant 0 : index
    %c0_52 = arith.constant 0 : index
    %127 = vector.load %arg8[%c0_50, %c0_51, %c0_52] : memref<2x32x64xf32, #tpu.memory_space<vmem>>, vector<1x32x64xf32>
    %128 = vector.shape_cast %127 : vector<1x32x64xf32> to vector<32x64xf32>
    %cst_53 = arith.constant dense<0.000000e+00> : vector<16x64xf32>
    %129 = tpu.matmul %126, %128, %cst_53 {dimension_numbers = #tpu.dot_dimension_numbers<[1], [0], [0], [1], [0, 0, 1, 1], [], []>} : vector<16x32xf32>, vector<32x64xf32>, vector<16x64xf32> -> vector<16x64xf32>
    %c0_54 = arith.constant 0 : index
    %c0_55 = arith.constant 0 : index
    %c0_56 = arith.constant 0 : index
    %130 = vector.load %arg9[%c0_54, %c0_55, %c0_56] : memref<2x1x64xf32, #tpu.memory_space<vmem>>, vector<1x1x64xf32>
    %131 = vector.shape_cast %130 : vector<1x1x64xf32> to vector<1x64xf32>
    %132 = vector.broadcast %131 : vector<1x64xf32> to vector<16x64xf32>
    %133 = arith.addf %129, %132 : vector<16x64xf32>
    %cst_57 = arith.constant 5.000000e-01 : f32
    %134 = vector.broadcast %cst_57 : f32 to vector<16x64xf32>
    %135 = arith.mulf %134, %133 : vector<16x64xf32>
    %cst_58 = arith.constant 0.707106769 : f32
    %136 = vector.broadcast %cst_58 : f32 to vector<16x64xf32>
    %137 = arith.mulf %133, %136 : vector<16x64xf32>
    %138 = math.erf %137 : vector<16x64xf32>
    %cst_59 = arith.constant 1.000000e+00 : f32
    %139 = vector.broadcast %cst_59 : f32 to vector<16x64xf32>
    %140 = arith.addf %139, %138 : vector<16x64xf32>
    %141 = arith.mulf %135, %140 : vector<16x64xf32>
    %c0_60 = arith.constant 0 : index
    %c0_61 = arith.constant 0 : index
    %c0_62 = arith.constant 0 : index
    %142 = vector.load %arg10[%c0_60, %c0_61, %c0_62] : memref<2x64x32xf32, #tpu.memory_space<vmem>>, vector<1x64x32xf32>
    %143 = vector.shape_cast %142 : vector<1x64x32xf32> to vector<64x32xf32>
    %cst_63 = arith.constant dense<0.000000e+00> : vector<16x32xf32>
    %144 = tpu.matmul %141, %143, %cst_63 {dimension_numbers = #tpu.dot_dimension_numbers<[1], [0], [0], [1], [0, 0, 1, 1], [], []>} : vector<16x64xf32>, vector<64x32xf32>, vector<16x32xf32> -> vector<16x32xf32>
    %145 = arith.addf %102, %144 : vector<16x32xf32>
    %c0_64 = arith.constant 0 : index
    %c0_65 = arith.constant 0 : index
    %c0_66 = arith.constant 0 : index
    %146 = vector.load %arg11[%c0_64, %c0_65, %c0_66] : memref<2x1x32xf32, #tpu.memory_space<vmem>>, vector<1x1x32xf32>
    %147 = vector.shape_cast %146 : vector<1x1x32xf32> to vector<1x32xf32>
    %148 = vector.broadcast %147 : vector<1x32xf32> to vector<16x32xf32>
    %149 = arith.addf %145, %148 : vector<16x32xf32>
    %c1 = arith.constant 1 : index
    %c0_67 = arith.constant 0 : index
    %c0_68 = arith.constant 0 : index
    %150 = vector.load %arg2[%c1, %c0_67, %c0_68] : memref<2x1x32xf32, #tpu.memory_space<vmem>>, vector<1x1x32xf32>
    %151 = vector.shape_cast %150 : vector<1x1x32xf32> to vector<1x32xf32>
    %c1_69 = arith.constant 1 : index
    %c0_70 = arith.constant 0 : index
    %c0_71 = arith.constant 0 : index
    %152 = vector.load %arg3[%c1_69, %c0_70, %c0_71] : memref<2x1x32xf32, #tpu.memory_space<vmem>>, vector<1x1x32xf32>
    %153 = vector.shape_cast %152 : vector<1x1x32xf32> to vector<1x32xf32>
    %cst_72 = arith.constant dense<0.000000e+00> : vector<16xf32>
    %154 = vector.multi_reduction <add>, %149, %cst_72 [1] : vector<16x32xf32> to vector<16xf32>
    %155 = vector.shape_cast %154 : vector<16xf32> to vector<16x1xf32>
    %cst_73 = arith.constant 3.200000e+01 : f32
    %156 = vector.broadcast %cst_73 : f32 to vector<16x1xf32>
    %157 = arith.divf %155, %156 : vector<16x1xf32>
    %158 = vector.broadcast %157 : vector<16x1xf32> to vector<16x32xf32>
    %159 = arith.subf %149, %158 : vector<16x32xf32>
    %160 = arith.mulf %159, %159 : vector<16x32xf32>
    %cst_74 = arith.constant dense<0.000000e+00> : vector<16xf32>
    %161 = vector.multi_reduction <add>, %160, %cst_74 [1] : vector<16x32xf32> to vector<16xf32>
    %162 = vector.shape_cast %161 : vector<16xf32> to vector<16x1xf32>
    %cst_75 = arith.constant 3.200000e+01 : f32
    %163 = vector.broadcast %cst_75 : f32 to vector<16x1xf32>
    %164 = arith.divf %162, %163 : vector<16x1xf32>
    %cst_76 = arith.constant 9.99999974E-6 : f32
    %165 = vector.broadcast %cst_76 : f32 to vector<16x1xf32>
    %166 = arith.addf %164, %165 : vector<16x1xf32>
    %167 = math.rsqrt %166 : vector<16x1xf32>
    %168 = vector.broadcast %167 : vector<16x1xf32> to vector<16x32xf32>
    %169 = arith.mulf %159, %168 : vector<16x32xf32>
    %170 = vector.broadcast %151 : vector<1x32xf32> to vector<16x32xf32>
    %171 = arith.mulf %169, %170 : vector<16x32xf32>
    %172 = vector.broadcast %153 : vector<1x32xf32> to vector<16x32xf32>
    %173 = arith.addf %171, %172 : vector<16x32xf32>
    %c1_77 = arith.constant 1 : index
    %c0_78 = arith.constant 0 : index
    %c0_79 = arith.constant 0 : index
    %174 = vector.load %arg4[%c1_77, %c0_78, %c0_79] : memref<2x32x96xf32, #tpu.memory_space<vmem>>, vector<1x32x96xf32>
    %175 = vector.shape_cast %174 : vector<1x32x96xf32> to vector<32x96xf32>
    %cst_80 = arith.constant dense<0.000000e+00> : vector<16x96xf32>
    %176 = tpu.matmul %173, %175, %cst_80 {dimension_numbers = #tpu.dot_dimension_numbers<[1], [0], [0], [1], [0, 0, 1, 1], [], []>} : vector<16x32xf32>, vector<32x96xf32>, vector<16x96xf32> -> vector<16x96xf32>
    %177 = vector.extract_strided_slice %176 {offsets = [0, 0], sizes = [8, 16], strides = [1, 1]} : vector<16x96xf32> to vector<8x16xf32>
    %178 = vector.extract_strided_slice %176 {offsets = [0, 32], sizes = [8, 16], strides = [1, 1]} : vector<16x96xf32> to vector<8x16xf32>
    %179 = vector.extract_strided_slice %176 {offsets = [0, 64], sizes = [8, 16], strides = [1, 1]} : vector<16x96xf32> to vector<8x16xf32>
    %cst_81 = arith.constant dense<0.000000e+00> : vector<8x8xf32>
    %180 = tpu.matmul %177, %178, %cst_81 {dimension_numbers = #tpu.dot_dimension_numbers<[1], [1], [0], [0], [0, 0, 1, 0], [], []>} : vector<8x16xf32>, vector<8x16xf32>, vector<8x8xf32> -> vector<8x8xf32>
    %cst_82 = arith.constant 2.500000e-01 : f32
    %181 = vector.broadcast %cst_82 : f32 to vector<8x8xf32>
    %182 = arith.mulf %180, %181 : vector<8x8xf32>
    %cst_83 = arith.constant dense<0xFF800000> : vector<8xf32>
    %183 = vector.multi_reduction <maximumf>, %182, %cst_83 [1] : vector<8x8xf32> to vector<8xf32>
    %184 = vector.shape_cast %183 : vector<8xf32> to vector<8x1xf32>
    %185 = vector.broadcast %184 : vector<8x1xf32> to vector<8x8xf32>
    %186 = arith.subf %182, %185 : vector<8x8xf32>
    %187 = math.exp %186 : vector<8x8xf32>
    %cst_84 = arith.constant dense<0.000000e+00> : vector<8xf32>
    %188 = vector.multi_reduction <add>, %187, %cst_84 [1] : vector<8x8xf32> to vector<8xf32>
    %189 = vector.shape_cast %188 : vector<8xf32> to vector<8x1xf32>
    %190 = tpu.reciprocal %189 {approx = true} : vector<8x1xf32> -> vector<8x1xf32>
    %191 = vector.broadcast %190 : vector<8x1xf32> to vector<8x8xf32>
    %192 = arith.mulf %187, %191 : vector<8x8xf32>
    %cst_85 = arith.constant dense<0.000000e+00> : vector<8x16xf32>
    %193 = tpu.matmul %192, %179, %cst_85 {dimension_numbers = #tpu.dot_dimension_numbers<[1], [0], [0], [1], [0, 0, 1, 1], [], []>} : vector<8x8xf32>, vector<8x16xf32>, vector<8x16xf32> -> vector<8x16xf32>
    %194 = vector.extract_strided_slice %176 {offsets = [0, 16], sizes = [8, 16], strides = [1, 1]} : vector<16x96xf32> to vector<8x16xf32>
    %195 = vector.extract_strided_slice %176 {offsets = [0, 48], sizes = [8, 16], strides = [1, 1]} : vector<16x96xf32> to vector<8x16xf32>
    %196 = vector.extract_strided_slice %176 {offsets = [0, 80], sizes = [8, 16], strides = [1, 1]} : vector<16x96xf32> to vector<8x16xf32>
    %cst_86 = arith.constant dense<0.000000e+00> : vector<8x8xf32>
    %197 = tpu.matmul %194, %195, %cst_86 {dimension_numbers = #tpu.dot_dimension_numbers<[1], [1], [0], [0], [0, 0, 1, 0], [], []>} : vector<8x16xf32>, vector<8x16xf32>, vector<8x8xf32> -> vector<8x8xf32>
    %cst_87 = arith.constant 2.500000e-01 : f32
    %198 = vector.broadcast %cst_87 : f32 to vector<8x8xf32>
    %199 = arith.mulf %197, %198 : vector<8x8xf32>
    %cst_88 = arith.constant dense<0xFF800000> : vector<8xf32>
    %200 = vector.multi_reduction <maximumf>, %199, %cst_88 [1] : vector<8x8xf32> to vector<8xf32>
    %201 = vector.shape_cast %200 : vector<8xf32> to vector<8x1xf32>
    %202 = vector.broadcast %201 : vector<8x1xf32> to vector<8x8xf32>
    %203 = arith.subf %199, %202 : vector<8x8xf32>
    %204 = math.exp %203 : vector<8x8xf32>
    %cst_89 = arith.constant dense<0.000000e+00> : vector<8xf32>
    %205 = vector.multi_reduction <add>, %204, %cst_89 [1] : vector<8x8xf32> to vector<8xf32>
    %206 = vector.shape_cast %205 : vector<8xf32> to vector<8x1xf32>
    %207 = tpu.reciprocal %206 {approx = true} : vector<8x1xf32> -> vector<8x1xf32>
    %208 = vector.broadcast %207 : vector<8x1xf32> to vector<8x8xf32>
    %209 = arith.mulf %204, %208 : vector<8x8xf32>
    %cst_90 = arith.constant dense<0.000000e+00> : vector<8x16xf32>
    %210 = tpu.matmul %209, %196, %cst_90 {dimension_numbers = #tpu.dot_dimension_numbers<[1], [0], [0], [1], [0, 0, 1, 1], [], []>} : vector<8x8xf32>, vector<8x16xf32>, vector<8x16xf32> -> vector<8x16xf32>
    %211 = tpu.concatenate %193, %210 in 1 : vector<8x16xf32>, vector<8x16xf32> -> vector<8x32xf32>
    %212 = vector.extract_strided_slice %176 {offsets = [8, 0], sizes = [8, 16], strides = [1, 1]} : vector<16x96xf32> to vector<8x16xf32>
    %213 = vector.extract_strided_slice %176 {offsets = [8, 32], sizes = [8, 16], strides = [1, 1]} : vector<16x96xf32> to vector<8x16xf32>
    %214 = vector.extract_strided_slice %176 {offsets = [8, 64], sizes = [8, 16], strides = [1, 1]} : vector<16x96xf32> to vector<8x16xf32>
    %cst_91 = arith.constant dense<0.000000e+00> : vector<8x8xf32>
    %215 = tpu.matmul %212, %213, %cst_91 {dimension_numbers = #tpu.dot_dimension_numbers<[1], [1], [0], [0], [0, 0, 1, 0], [], []>} : vector<8x16xf32>, vector<8x16xf32>, vector<8x8xf32> -> vector<8x8xf32>
    %cst_92 = arith.constant 2.500000e-01 : f32
    %216 = vector.broadcast %cst_92 : f32 to vector<8x8xf32>
    %217 = arith.mulf %215, %216 : vector<8x8xf32>
    %cst_93 = arith.constant dense<0xFF800000> : vector<8xf32>
    %218 = vector.multi_reduction <maximumf>, %217, %cst_93 [1] : vector<8x8xf32> to vector<8xf32>
    %219 = vector.shape_cast %218 : vector<8xf32> to vector<8x1xf32>
    %220 = vector.broadcast %219 : vector<8x1xf32> to vector<8x8xf32>
    %221 = arith.subf %217, %220 : vector<8x8xf32>
    %222 = math.exp %221 : vector<8x8xf32>
    %cst_94 = arith.constant dense<0.000000e+00> : vector<8xf32>
    %223 = vector.multi_reduction <add>, %222, %cst_94 [1] : vector<8x8xf32> to vector<8xf32>
    %224 = vector.shape_cast %223 : vector<8xf32> to vector<8x1xf32>
    %225 = tpu.reciprocal %224 {approx = true} : vector<8x1xf32> -> vector<8x1xf32>
    %226 = vector.broadcast %225 : vector<8x1xf32> to vector<8x8xf32>
    %227 = arith.mulf %222, %226 : vector<8x8xf32>
    %cst_95 = arith.constant dense<0.000000e+00> : vector<8x16xf32>
    %228 = tpu.matmul %227, %214, %cst_95 {dimension_numbers = #tpu.dot_dimension_numbers<[1], [0], [0], [1], [0, 0, 1, 1], [], []>} : vector<8x8xf32>, vector<8x16xf32>, vector<8x16xf32> -> vector<8x16xf32>
    %229 = vector.extract_strided_slice %176 {offsets = [8, 16], sizes = [8, 16], strides = [1, 1]} : vector<16x96xf32> to vector<8x16xf32>
    %230 = vector.extract_strided_slice %176 {offsets = [8, 48], sizes = [8, 16], strides = [1, 1]} : vector<16x96xf32> to vector<8x16xf32>
    %231 = vector.extract_strided_slice %176 {offsets = [8, 80], sizes = [8, 16], strides = [1, 1]} : vector<16x96xf32> to vector<8x16xf32>
    %cst_96 = arith.constant dense<0.000000e+00> : vector<8x8xf32>
    %232 = tpu.matmul %229, %230, %cst_96 {dimension_numbers = #tpu.dot_dimension_numbers<[1], [1], [0], [0], [0, 0, 1, 0], [], []>} : vector<8x16xf32>, vector<8x16xf32>, vector<8x8xf32> -> vector<8x8xf32>
    %cst_97 = arith.constant 2.500000e-01 : f32
    %233 = vector.broadcast %cst_97 : f32 to vector<8x8xf32>
    %234 = arith.mulf %232, %233 : vector<8x8xf32>
    %cst_98 = arith.constant dense<0xFF800000> : vector<8xf32>
    %235 = vector.multi_reduction <maximumf>, %234, %cst_98 [1] : vector<8x8xf32> to vector<8xf32>
    %236 = vector.shape_cast %235 : vector<8xf32> to vector<8x1xf32>
    %237 = vector.broadcast %236 : vector<8x1xf32> to vector<8x8xf32>
    %238 = arith.subf %234, %237 : vector<8x8xf32>
    %239 = math.exp %238 : vector<8x8xf32>
    %cst_99 = arith.constant dense<0.000000e+00> : vector<8xf32>
    %240 = vector.multi_reduction <add>, %239, %cst_99 [1] : vector<8x8xf32> to vector<8xf32>
    %241 = vector.shape_cast %240 : vector<8xf32> to vector<8x1xf32>
    %242 = tpu.reciprocal %241 {approx = true} : vector<8x1xf32> -> vector<8x1xf32>
    %243 = vector.broadcast %242 : vector<8x1xf32> to vector<8x8xf32>
    %244 = arith.mulf %239, %243 : vector<8x8xf32>
    %cst_100 = arith.constant dense<0.000000e+00> : vector<8x16xf32>
    %245 = tpu.matmul %244, %231, %cst_100 {dimension_numbers = #tpu.dot_dimension_numbers<[1], [0], [0], [1], [0, 0, 1, 1], [], []>} : vector<8x8xf32>, vector<8x16xf32>, vector<8x16xf32> -> vector<8x16xf32>
    %246 = tpu.concatenate %228, %245 in 1 : vector<8x16xf32>, vector<8x16xf32> -> vector<8x32xf32>
    %247 = tpu.concatenate %211, %246 in 0 : vector<8x32xf32>, vector<8x32xf32> -> vector<16x32xf32>
    %c1_101 = arith.constant 1 : index
    %c0_102 = arith.constant 0 : index
    %c0_103 = arith.constant 0 : index
    %248 = vector.load %arg5[%c1_101, %c0_102, %c0_103] : memref<2x32x32xf32, #tpu.memory_space<vmem>>, vector<1x32x32xf32>
    %249 = vector.shape_cast %248 : vector<1x32x32xf32> to vector<32x32xf32>
    %cst_104 = arith.constant dense<0.000000e+00> : vector<16x32xf32>
    %250 = tpu.matmul %247, %249, %cst_104 {dimension_numbers = #tpu.dot_dimension_numbers<[1], [0], [0], [1], [0, 0, 1, 1], [], []>} : vector<16x32xf32>, vector<32x32xf32>, vector<16x32xf32> -> vector<16x32xf32>
    %251 = arith.addf %149, %250 : vector<16x32xf32>
    %c1_105 = arith.constant 1 : index
    %c0_106 = arith.constant 0 : index
    %c0_107 = arith.constant 0 : index
    %252 = vector.load %arg6[%c1_105, %c0_106, %c0_107] : memref<2x1x32xf32, #tpu.memory_space<vmem>>, vector<1x1x32xf32>
    %253 = vector.shape_cast %252 : vector<1x1x32xf32> to vector<1x32xf32>
    %c1_108 = arith.constant 1 : index
    %c0_109 = arith.constant 0 : index
    %c0_110 = arith.constant 0 : index
    %254 = vector.load %arg7[%c1_108, %c0_109, %c0_110] : memref<2x1x32xf32, #tpu.memory_space<vmem>>, vector<1x1x32xf32>
    %255 = vector.shape_cast %254 : vector<1x1x32xf32> to vector<1x32xf32>
    %cst_111 = arith.constant dense<0.000000e+00> : vector<16xf32>
    %256 = vector.multi_reduction <add>, %251, %cst_111 [1] : vector<16x32xf32> to vector<16xf32>
    %257 = vector.shape_cast %256 : vector<16xf32> to vector<16x1xf32>
    %cst_112 = arith.constant 3.200000e+01 : f32
    %258 = vector.broadcast %cst_112 : f32 to vector<16x1xf32>
    %259 = arith.divf %257, %258 : vector<16x1xf32>
    %260 = vector.broadcast %259 : vector<16x1xf32> to vector<16x32xf32>
    %261 = arith.subf %251, %260 : vector<16x32xf32>
    %262 = arith.mulf %261, %261 : vector<16x32xf32>
    %cst_113 = arith.constant dense<0.000000e+00> : vector<16xf32>
    %263 = vector.multi_reduction <add>, %262, %cst_113 [1] : vector<16x32xf32> to vector<16xf32>
    %264 = vector.shape_cast %263 : vector<16xf32> to vector<16x1xf32>
    %cst_114 = arith.constant 3.200000e+01 : f32
    %265 = vector.broadcast %cst_114 : f32 to vector<16x1xf32>
    %266 = arith.divf %264, %265 : vector<16x1xf32>
    %cst_115 = arith.constant 9.99999974E-6 : f32
    %267 = vector.broadcast %cst_115 : f32 to vector<16x1xf32>
    %268 = arith.addf %266, %267 : vector<16x1xf32>
    %269 = math.rsqrt %268 : vector<16x1xf32>
    %270 = vector.broadcast %269 : vector<16x1xf32> to vector<16x32xf32>
    %271 = arith.mulf %261, %270 : vector<16x32xf32>
    %272 = vector.broadcast %253 : vector<1x32xf32> to vector<16x32xf32>
    %273 = arith.mulf %271, %272 : vector<16x32xf32>
    %274 = vector.broadcast %255 : vector<1x32xf32> to vector<16x32xf32>
    %275 = arith.addf %273, %274 : vector<16x32xf32>
    %c1_116 = arith.constant 1 : index
    %c0_117 = arith.constant 0 : index
    %c0_118 = arith.constant 0 : index
    %276 = vector.load %arg8[%c1_116, %c0_117, %c0_118] : memref<2x32x64xf32, #tpu.memory_space<vmem>>, vector<1x32x64xf32>
    %277 = vector.shape_cast %276 : vector<1x32x64xf32> to vector<32x64xf32>
    %cst_119 = arith.constant dense<0.000000e+00> : vector<16x64xf32>
    %278 = tpu.matmul %275, %277, %cst_119 {dimension_numbers = #tpu.dot_dimension_numbers<[1], [0], [0], [1], [0, 0, 1, 1], [], []>} : vector<16x32xf32>, vector<32x64xf32>, vector<16x64xf32> -> vector<16x64xf32>
    %c1_120 = arith.constant 1 : index
    %c0_121 = arith.constant 0 : index
    %c0_122 = arith.constant 0 : index
    %279 = vector.load %arg9[%c1_120, %c0_121, %c0_122] : memref<2x1x64xf32, #tpu.memory_space<vmem>>, vector<1x1x64xf32>
    %280 = vector.shape_cast %279 : vector<1x1x64xf32> to vector<1x64xf32>
    %281 = vector.broadcast %280 : vector<1x64xf32> to vector<16x64xf32>
    %282 = arith.addf %278, %281 : vector<16x64xf32>
    %cst_123 = arith.constant 5.000000e-01 : f32
    %283 = vector.broadcast %cst_123 : f32 to vector<16x64xf32>
    %284 = arith.mulf %283, %282 : vector<16x64xf32>
    %cst_124 = arith.constant 0.707106769 : f32
    %285 = vector.broadcast %cst_124 : f32 to vector<16x64xf32>
    %286 = arith.mulf %282, %285 : vector<16x64xf32>
    %287 = math.erf %286 : vector<16x64xf32>
    %cst_125 = arith.constant 1.000000e+00 : f32
    %288 = vector.broadcast %cst_125 : f32 to vector<16x64xf32>
    %289 = arith.addf %288, %287 : vector<16x64xf32>
    %290 = arith.mulf %284, %289 : vector<16x64xf32>
    %c1_126 = arith.constant 1 : index
    %c0_127 = arith.constant 0 : index
    %c0_128 = arith.constant 0 : index
    %291 = vector.load %arg10[%c1_126, %c0_127, %c0_128] : memref<2x64x32xf32, #tpu.memory_space<vmem>>, vector<1x64x32xf32>
    %292 = vector.shape_cast %291 : vector<1x64x32xf32> to vector<64x32xf32>
    %cst_129 = arith.constant dense<0.000000e+00> : vector<16x32xf32>
    %293 = tpu.matmul %290, %292, %cst_129 {dimension_numbers = #tpu.dot_dimension_numbers<[1], [0], [0], [1], [0, 0, 1, 1], [], []>} : vector<16x64xf32>, vector<64x32xf32>, vector<16x32xf32> -> vector<16x32xf32>
    %294 = arith.addf %251, %293 : vector<16x32xf32>
    %c1_130 = arith.constant 1 : index
    %c0_131 = arith.constant 0 : index
    %c0_132 = arith.constant 0 : index
    %295 = vector.load %arg11[%c1_130, %c0_131, %c0_132] : memref<2x1x32xf32, #tpu.memory_space<vmem>>, vector<1x1x32xf32>
    %296 = vector.shape_cast %295 : vector<1x1x32xf32> to vector<1x32xf32>
    %297 = vector.broadcast %296 : vector<1x32xf32> to vector<16x32xf32>
    %298 = arith.addf %294, %297 : vector<16x32xf32>
    %c0_133 = arith.constant 0 : index
    %c0_134 = arith.constant 0 : index
    %299 = vector.load %arg12[%c0_133, %c0_134] : memref<16x32xf32, #tpu.memory_space<vmem>>, vector<16x32xf32>
    tpu.vector_store %arg12[%c0_133, %c0_134], %298 {strides = array<i32>} : memref<16x32xf32, #tpu.memory_space<vmem>>, vector<16x32xf32>,
    return
  }
  func.func @transform_0(%arg0: i32) -> (i32, i32) {
    %c0_i32 = arith.constant 0 : i32
    %c0_i32_0 = arith.constant 0 : i32
    return %arg0, %c0_i32 : i32, i32
  }
  func.func @transform_1(%arg0: i32) -> (i32, i32, i32) {
    %c0_i32 = arith.constant 0 : i32
    %c0_i32_0 = arith.constant 0 : i32
    %c0_i32_1 = arith.constant 0 : i32
    %c0_i32_2 = arith.constant 0 : i32
    return %c0_i32, %c0_i32_0, %c0_i32_1 : i32, i32, i32
  }
  func.func @transform_2(%arg0: i32) -> (i32, i32, i32) {
    %c0_i32 = arith.constant 0 : i32
    %c0_i32_0 = arith.constant 0 : i32
    %c0_i32_1 = arith.constant 0 : i32
    %c0_i32_2 = arith.constant 0 : i32
    return %c0_i32, %c0_i32_0, %c0_i32_1 : i32, i32, i32
  }
  func.func @transform_3(%arg0: i32) -> (i32, i32, i32) {
    %c0_i32 = arith.constant 0 : i32
    %c0_i32_0 = arith.constant 0 : i32
    %c0_i32_1 = arith.constant 0 : i32
    %c0_i32_2 = arith.constant 0 : i32
    return %c0_i32, %c0_i32_0, %c0_i32_1 : i32, i32, i32
  }
  func.func @transform_4(%arg0: i32) -> (i32, i32, i32) {
    %c0_i32 = arith.constant 0 : i32
    %c0_i32_0 = arith.constant 0 : i32
    %c0_i32_1 = arith.constant 0 : i32
    %c0_i32_2 = arith.constant 0 : i32
    return %c0_i32, %c0_i32_0, %c0_i32_1 : i32, i32, i32
  }
  func.func @transform_5(%arg0: i32) -> (i32, i32, i32) {
    %c0_i32 = arith.constant 0 : i32
    %c0_i32_0 = arith.constant 0 : i32
    %c0_i32_1 = arith.constant 0 : i32
    %c0_i32_2 = arith.constant 0 : i32
    return %c0_i32, %c0_i32_0, %c0_i32_1 : i32, i32, i32
  }
  func.func @transform_6(%arg0: i32) -> (i32, i32, i32) {
    %c0_i32 = arith.constant 0 : i32
    %c0_i32_0 = arith.constant 0 : i32
    %c0_i32_1 = arith.constant 0 : i32
    %c0_i32_2 = arith.constant 0 : i32
    return %c0_i32, %c0_i32_0, %c0_i32_1 : i32, i32, i32
  }
  func.func @transform_7(%arg0: i32) -> (i32, i32, i32) {
    %c0_i32 = arith.constant 0 : i32
    %c0_i32_0 = arith.constant 0 : i32
    %c0_i32_1 = arith.constant 0 : i32
    %c0_i32_2 = arith.constant 0 : i32
    return %c0_i32, %c0_i32_0, %c0_i32_1 : i32, i32, i32
  }
  func.func @transform_8(%arg0: i32) -> (i32, i32, i32) {
    %c0_i32 = arith.constant 0 : i32
    %c0_i32_0 = arith.constant 0 : i32
    %c0_i32_1 = arith.constant 0 : i32
    %c0_i32_2 = arith.constant 0 : i32
    return %c0_i32, %c0_i32_0, %c0_i32_1 : i32, i32, i32
  }
  func.func @transform_9(%arg0: i32) -> (i32, i32, i32) {
    %c0_i32 = arith.constant 0 : i32
    %c0_i32_0 = arith.constant 0 : i32
    %c0_i32_1 = arith.constant 0 : i32
    %c0_i32_2 = arith.constant 0 : i32
    return %c0_i32, %c0_i32_0, %c0_i32_1 : i32, i32, i32
  }
  func.func @transform_10(%arg0: i32) -> (i32, i32, i32) {
    %c0_i32 = arith.constant 0 : i32
    %c0_i32_0 = arith.constant 0 : i32
    %c0_i32_1 = arith.constant 0 : i32
    %c0_i32_2 = arith.constant 0 : i32
    return %c0_i32, %c0_i32_0, %c0_i32_1 : i32, i32, i32
  }
  func.func @transform_11(%arg0: i32) -> (i32, i32) {
    %c0_i32 = arith.constant 0 : i32
    %c0_i32_0 = arith.constant 0 : i32
    return %arg0, %c0_i32 : i32, i32
  }
}

</mosaic_0001>

<llo_original>
// kernel: transformer_forward.1
$region0: #{transformer_forward.1}
  #allocation0 [shape = 'u32[]', space=smem, size = 0x4, offset = 0x4, fixed_abs, tag = 'smem constant byte address 0x4 - core index']
  #allocation1 [shape = 'u32[144,128]{1,0:T(1,128)}', space=vmem, size = 0x12000, scoped, tag = 'internal scratch']
  %s0 = inlined_call_operand.hbm [shape: f32[16,32], index: 0, kind: input, shape index: {}]
  %s1 = inlined_call_operand.vmem [shape: f32[2,1,32], index: 1, kind: input, shape index: {}]
  %s2 = inlined_call_operand.vmem [shape: f32[2,1,32], index: 2, kind: input, shape index: {}]
  %s3 = inlined_call_operand.vmem [shape: f32[2,32,96], index: 3, kind: input, shape index: {}]
  %s4 = inlined_call_operand.vmem [shape: f32[2,32,32], index: 4, kind: input, shape index: {}]
  %s5 = inlined_call_operand.vmem [shape: f32[2,1,32], index: 5, kind: input, shape index: {}]
  %s6 = inlined_call_operand.vmem [shape: f32[2,1,32], index: 6, kind: input, shape index: {}]
  %s7 = inlined_call_operand.vmem [shape: f32[2,32,64], index: 7, kind: input, shape index: {}]
  %s8 = inlined_call_operand.hbm [shape: f32[2,1,64], index: 8, kind: input, shape index: {}]
  %s9 = inlined_call_operand.vmem [shape: f32[2,64,32], index: 9, kind: input, shape index: {}]
  %s10 = inlined_call_operand.hbm [shape: f32[2,1,32], index: 10, kind: input, shape index: {}]
  %s11 = inlined_call_operand.hbm [shape: f32[16,32], index: 11, kind: output, shape index: {}]
  %s12 = sld [smem:[#allocation0]]
  $region66: #{transformer_forward.1} parent=0
    _
  %s14 = ssub.s32 1, %s12
  %s15 = scalar_select 0, %s14, %s12
  $region1: #{transformer_forward.1} parent=0
    #allocation2 [shape = 'u8[8192]{0}', space=vmem, size = 0x2000, scoped, tag = 'input window, operand 0, single buffered']
    #allocation3 [shape = 's32[1]{0}', space=sflag, size = 0x4, scoped, tag = 'scoped memory for transformer_forward.1']
    #allocation4 [shape = 's32[1]{0}', space=sflag, size = 0x4, scoped, tag = 'scoped memory for transformer_forward.1']
    #allocation5 [shape = 'u8[1024]{0}', space=vmem, size = 0x400, scoped, tag = 'input window, operand 8, single buffered']
    #allocation6 [shape = 's32[1]{0}', space=sflag, size = 0x4, scoped, tag = 'scoped memory for transformer_forward.1']
    #allocation7 [shape = 'u8[1024]{0}', space=vmem, size = 0x400, scoped, tag = 'input window, operand 10, single buffered']
    #allocation8 [shape = 'u8[8192]{0}', space=vmem, size = 0x2000, scoped, tag = 'output window, operand 0, single buffered']
    %16 = vsyncpa [#allocation3], 0
    %17 = vsyncpa [#allocation6], 0
    %18 = vsyncpa [#allocation4], 0
    // Predicated region
    $region2: #{transformer_forward.1} parent=1 // pred_check
      _
    $region3: #{transformer_forward.1} parent=1 // pred_check_branch
      %20 = sbr.rel (0) target = $region5
    $region4: #{transformer_forward.1} parent=1 // pred_region
      %s22 = ssub.s32 256, 256
      %23 = vsyncadd [#allocation3], %s22
      %s24 = sshll.u32 [#allocation2], 4
      %s25 = int_to_ptr.vmem [resolvable:$true] %s24
      %30 = dma.hbm_to_vmem [thread:$0]  %s0, 256, %s25, [#allocation3], 128, 128, 8
    $region5: #{transformer_forward.1} parent=1 // pred_fallthru
      _
    // Predicated region
    $region6: #{transformer_forward.1} parent=1 // pred_check
      _
    $region7: #{transformer_forward.1} parent=1 // pred_check_branch
      %32 = sbr.rel (0) target = $region9
    $region8: #{transformer_forward.1} parent=1 // pred_region
      _
    $region9: #{transformer_forward.1} parent=1 // pred_fallthru
      _
    // Predicated region
    $region10: #{transformer_forward.1} parent=1 // pred_check
      _
    $region11: #{transformer_forward.1} parent=1 // pred_check_branch
      %34 = sbr.rel (0) target = $region13
    $region12: #{transformer_forward.1} parent=1 // pred_region
      _
    $region13: #{transformer_forward.1} parent=1 // pred_fallthru
      _
    // Predicated region
    $region14: #{transformer_forward.1} parent=1 // pred_check
      _
    $region15: #{transformer_forward.1} parent=1 // pred_check_branch
      %36 = sbr.rel (0) target = $region17
    $region16: #{transformer_forward.1} parent=1 // pred_region
      _
    $region17: #{transformer_forward.1} parent=1 // pred_fallthru
      _
    // Predicated region
    $region18: #{transformer_forward.1} parent=1 // pred_check
      _
    $region19: #{transformer_forward.1} parent=1 // pred_check_branch
      %38 = sbr.rel (0) target = $region21
    $region20: #{transformer_forward.1} parent=1 // pred_region
      _
    $region21: #{transformer_forward.1} parent=1 // pred_fallthru
      _
    // Predicated region
    $region22: #{transformer_forward.1} parent=1 // pred_check
      _
    $region23: #{transformer_forward.1} parent=1 // pred_check_branch
      %40 = sbr.rel (0) target = $region25
    $region24: #{transformer_forward.1} parent=1 // pred_region
      _
    $region25: #{transformer_forward.1} parent=1 // pred_fallthru
      _
    // Predicated region
    $region26: #{transformer_forward.1} parent=1 // pred_check
      _
    $region27: #{transformer_forward.1} parent=1 // pred_check_branch
      %42 = sbr.rel (0) target = $region29
    $region28: #{transformer_forward.1} parent=1 // pred_region
      _
    $region29: #{transformer_forward.1} parent=1 // pred_fallthru
      _
    // Predicated region
    $region30: #{transformer_forward.1} parent=1 // pred_check
      _
    $region31: #{transformer_forward.1} parent=1 // pred_check_branch
      %44 = sbr.rel (0) target = $region33
    $region32: #{transformer_forward.1} parent=1 // pred_region
      _
    $region33: #{transformer_forward.1} parent=1 // pred_fallthru
      _
    // Predicated region
    $region34: #{transformer_forward.1} parent=1 // pred_check
      _
    $region35: #{transformer_forward.1} parent=1 // pred_check_branch
      %46 = sbr.rel (0) target = $region37
    $region36: #{transformer_forward.1} parent=1 // pred_region
      %s48 = ssub.s32 32, 32
      %49 = vsyncadd [#allocation6], %s48
      %s50 = sshll.u32 [#allocation5], 4
      %s51 = int_to_ptr.vmem [resolvable:$true] %s50
      %56 = dma.hbm_to_vmem [thread:$0]  %s8, 32, %s51, [#allocation6], 16, 16, 1
    $region37: #{transformer_forward.1} parent=1 // pred_fallthru
      _
    // Predicated region
    $region38: #{transformer_forward.1} parent=1 // pred_check
      _
    $region39: #{transformer_forward.1} parent=1 // pred_check_branch
      %58 = sbr.rel (0) target = $region41
    $region40: #{transformer_forward.1} parent=1 // pred_region
      _
    $region41: #{transformer_forward.1} parent=1 // pred_fallthru
      _
    // Predicated region
    $region42: #{transformer_forward.1} parent=1 // pred_check
      _
    $region43: #{transformer_forward.1} parent=1 // pred_check_branch
      %60 = sbr.rel (0) target = $region45
    $region44: #{transformer_forward.1} parent=1 // pred_region
      %s62 = ssub.s32 32, 32
      %63 = vsyncadd [#allocation6], %s62
      %s64 = sshll.u32 [#allocation7], 4
      %s65 = int_to_ptr.vmem [resolvable:$true] %s64
      %70 = dma.hbm_to_vmem [thread:$0]  %s10, 32, %s65, [#allocation6], 16, 16, 1
    $region45: #{transformer_forward.1} parent=1 // pred_fallthru
      _
    // Predicated region
    $region46: #{transformer_forward.1} parent=1 // pred_check
      _
    $region47: #{transformer_forward.1} parent=1 // pred_check_branch
      %72 = sbr.rel (0) target = $region49
    $region48: #{transformer_forward.1} parent=1 // pred_region
      %73 = dma.done [#allocation3], 256
    $region49: #{transformer_forward.1} parent=1 // pred_fallthru
      _
    // Predicated region
    $region50: #{transformer_forward.1} parent=1 // pred_check
      _
    $region51: #{transformer_forward.1} parent=1 // pred_check_branch
      %75 = sbr.rel (0) target = $region53
    $region52: #{transformer_forward.1} parent=1 // pred_region
      %76 = dma.done [#allocation6], 32
    $region53: #{transformer_forward.1} parent=1 // pred_fallthru
      _
    // Predicated region
    $region54: #{transformer_forward.1} parent=1 // pred_check
      _
    $region55: #{transformer_forward.1} parent=1 // pred_check_branch
      %78 = sbr.rel (0) target = $region57
    $region56: #{transformer_forward.1} parent=1 // pred_region
      %79 = dma.done [#allocation6], 32
    $region57: #{transformer_forward.1} parent=1 // pred_fallthru
      _
    %v80 = vld [vmem:[#allocation2] sm:$0xff]
    %v81 = vld [vmem:[#allocation2 + $0x8] sm:$0xff]
    %v82 = vld [vmem:[%s1] sm:$0x1]
    %v83 = vld [vmem:[%s2] sm:$0x1]
    %vm84 = vcmask 261120
    %v85 = vsel %vm84, %v80, 0.0
    %86 = vadd.xlane.f32.xlu0 %v85
    %v87 = vpop.xlane.xlu0 %86
    %v88 = vsel %vm84, %v81, 0.0
    %89 = vadd.xlane.f32.xlu0 %v88
    %v90 = vpop.xlane.xlu0 %89
    %v91 = vrcp.pop 32.0
    %v92 = vmul.f32 %v87, %v91
    %v93 = vmul.f32 %v90, %v91
    %v94 = vsub.f32 %v80, %v92
    %v95 = vsub.f32 %v81, %v93
    %v96 = vmul.f32 %v94, %v94
    %v97 = vmul.f32 %v95, %v95
    %v98 = vsel %vm84, %v96, 0.0
    %99 = vadd.xlane.f32.xlu0 %v98
    %v100 = vpop.xlane.xlu0 %99
    %v101 = vsel %vm84, %v97, 0.0
    %102 = vadd.xlane.f32.xlu0 %v101
    %v103 = vpop.xlane.xlu0 %102
    %v104 = vmul.f32 %v100, %v91
    %v105 = vmul.f32 %v103, %v91
    %v106 = vadd.f32 %v104, 1e-05
    %v107 = vadd.f32 %v105, 1e-05
    %v108 = vrsqrt.pop %v106
    %v109 = vrsqrt.pop %v107
    %v110 = vmul.f32 %v94, %v108
    %v111 = vmul.f32 %v95, %v109
    %v113 = vlaneseq
    %v114 = vshrl.u32 %v113, 7
    %v115 = vsub.s32 0, %v114
    %v116 = vrot.slane %v82, %v115
    %v118 = vmul.f32 %v110, %v116
    %v119 = vmul.f32 %v111, %v116
    %v121 = vlaneseq
    %v122 = vshrl.u32 %v121, 7
    %v123 = vsub.s32 0, %v122
    %v124 = vrot.slane %v83, %v123
    %v126 = vadd.f32 %v118, %v124
    %v127 = vadd.f32 %v119, %v124
    %v128 = vld [vmem:[%s3] sm:$0xff]
    %v129 = vld [vmem:[%s3 + $0x8] sm:$0xff]
    %v130 = vld [vmem:[%s3 + $0x10] sm:$0xff]
    %v131 = vld [vmem:[%s3 + $0x18] sm:$0xff]
    %v133 = vsel %vm84, %v126, 0
    %v136 = vsel %vm84, %v127, 0
    %138 = vmatprep.subr.mxu0 0.0
    %139 = vmatpush1.msra.mxu0 0.0
    %140 = vmatprep.subr.mxu0 0.0
    %141 = vmatpush1.msra.mxu0 0.0
    %142 = vmatprep.subr.mxu0 0.0
    %143 = vmatpush1.msra.mxu0 0.0
    %144 = vmatprep.subr.mxu0 0.0
    %145 = vmatpush1.msra.mxu0 0.0
    %146 = vmatprep.subr.mxu0 0.0
    %147 = vmatpush1.msra.mxu0 0.0
    %148 = vmatprep.subr.mxu0 0.0
    %149 = vmatpush1.msra.mxu0 0.0
    %150 = vmatprep.subr.mxu0 0.0
    %151 = vmatpush1.msra.mxu0 0.0
    %152 = vmatprep.subr.mxu0 0.0
    %153 = vmatpush1.msra.mxu0 0.0
    %154 = vmatprep.subr.mxu0 0.0
    %155 = vmatpush1.msra.mxu0 0.0
    %156 = vmatprep.subr.mxu0 0.0
    %157 = vmatpush1.msra.mxu0 0.0
    %158 = vmatprep.subr.mxu0 0.0
    %159 = vmatpush1.msra.mxu0 0.0
    %160 = vmatprep.subr.mxu0 0.0
    %161 = vmatpush1.msra.mxu0 0.0
    %162 = vmatprep.subr.mxu0 0.0
    %163 = vmatpush1.msra.mxu0 %v131
    %164 = vmatprep.subr.mxu0 0.0
    %165 = vmatpush1.msra.mxu0 %v130
    %166 = vmatprep.subr.mxu0 0.0
    %167 = vmatpush1.msra.mxu0 %v129
    %168 = vmatprep.subr.mxu0 0.0
    %169 = vmatpush1.msra.mxu0 %v128
    %170 = vmatprep.subr.mxu0 0.0
    %171 = vmatpush2.msra.mxu0 0.0
    %172 = vmatprep.subr.mxu0 0.0
    %173 = vmatpush2.msra.mxu0 0.0
    %174 = vmatprep.subr.mxu0 0.0
    %175 = vmatpush2.msra.mxu0 0.0
    %176 = vmatprep.subr.mxu0 0.0
    %177 = vmatpush2.msra.mxu0 0.0
    %178 = vmatprep.subr.mxu0 0.0
    %179 = vmatpush2.msra.mxu0 0.0
    %180 = vmatprep.subr.mxu0 0.0
    %181 = vmatpush2.msra.mxu0 0.0
    %182 = vmatprep.subr.mxu0 0.0
    %183 = vmatpush2.msra.mxu0 0.0
    %184 = vmatprep.subr.mxu0 0.0
    %185 = vmatpush2.msra.mxu0 0.0
    %186 = vmatprep.subr.mxu0 0.0
    %187 = vmatpush2.msra.mxu0 0.0
    %188 = vmatprep.subr.mxu0 0.0
    %189 = vmatpush2.msra.mxu0 0.0
    %190 = vmatprep.subr.mxu0 0.0
    %191 = vmatpush2.msra.mxu0 0.0
    %192 = vmatprep.subr.mxu0 0.0
    %193 = vmatpush2.msra.mxu0 0.0
    %194 = vmatprep.subr.mxu0 0.0
    %195 = vmatpush2.msra.mxu0 0.0
    %196 = vmatprep.subr.mxu0 0.0
    %197 = vmatpush2.msra.mxu0 0.0
    %198 = vmatprep.subr.mxu0 0.0
    %199 = vmatpush2.msra.mxu0 0.0
    %200 = vmatprep.subr.mxu0 0.0
    %201 = vmatpush2.msra.mxu0 0.0
    %202 = vmatprep.mubr.f32.mxu0 0.0
    %203 = vmatmul.mubr.f32.gmra.mxu0 %v133
    %v204 = vpop.f32.mrf.mxu0
    %v205 = vadd.f32 0.0, %v204
    %v206 = vpop.f32.mrf.mxu0
    %207 = vmatprep.mubr.f32.mxu0 0.0
    %208 = vmatmul.mubr.f32.gmra.mxu0 %v136
    %v209 = vpop.f32.mrf.mxu0
    %v210 = vadd.f32 0.0, %v209
    %v211 = vpop.f32.mrf.mxu0
    %212 = vdwg.mxu0
    %214 = vrot.lane.b32.xlu0 %v205, 96
    %v215 = vpop.permute.xlu0 %214
    %vm216 = vcmask 130048
    %v217 = vsel %vm216, %v205, 0
    %v219 = vsel %vm216, %v215, 0
    %221 = vmatprep.subr.mxu0 0.0
    %222 = vmatpush1.xpose.msra.mxu0 0.0
    %223 = vmatprep.subr.mxu0 0.0
    %224 = vmatpush1.xpose.msra.mxu0 0.0
    %225 = vmatprep.subr.mxu0 0.0
    %226 = vmatpush1.xpose.msra.mxu0 0.0
    %227 = vmatprep.subr.mxu0 0.0
    %228 = vmatpush1.xpose.msra.mxu0 0.0
    %229 = vmatprep.subr.mxu0 0.0
    %230 = vmatpush1.xpose.msra.mxu0 0.0
    %231 = vmatprep.subr.mxu0 0.0
    %232 = vmatpush1.xpose.msra.mxu0 0.0
    %233 = vmatprep.subr.mxu0 0.0
    %234 = vmatpush1.xpose.msra.mxu0 0.0
    %235 = vmatprep.subr.mxu0 0.0
    %236 = vmatpush1.xpose.msra.mxu0 0.0
    %237 = vmatprep.subr.mxu0 0.0
    %238 = vmatpush1.xpose.msra.mxu0 0.0
    %239 = vmatprep.subr.mxu0 0.0
    %240 = vmatpush1.xpose.msra.mxu0 0.0
    %241 = vmatprep.subr.mxu0 0.0
    %242 = vmatpush1.xpose.msra.mxu0 0.0
    %243 = vmatprep.subr.mxu0 0.0
    %244 = vmatpush1.xpose.msra.mxu0 0.0
    %245 = vmatprep.subr.mxu0 0.0
    %246 = vmatpush1.xpose.msra.mxu0 0.0
    %247 = vmatprep.subr.mxu0 0.0
    %248 = vmatpush1.xpose.msra.mxu0 0.0
    %249 = vmatprep.subr.mxu0 0.0
    %250 = vmatpush1.xpose.msra.mxu0 0.0
    %251 = vmatprep.subr.mxu0 0.0
    %252 = vmatpush1.xpose.msra.mxu0 %v219
    %253 = vmatprep.subr.mxu0 0.0
    %254 = vmatpush2.xpose.msra.mxu0 0.0
    %255 = vmatprep.subr.mxu0 0.0
    %256 = vmatpush2.xpose.msra.mxu0 0.0
    %257 = vmatprep.subr.mxu0 0.0
    %258 = vmatpush2.xpose.msra.mxu0 0.0
    %259 = vmatprep.subr.mxu0 0.0
    %260 = vmatpush2.xpose.msra.mxu0 0.0
    %261 = vmatprep.subr.mxu0 0.0
    %262 = vmatpush2.xpose.msra.mxu0 0.0
    %263 = vmatprep.subr.mxu0 0.0
    %264 = vmatpush2.xpose.msra.mxu0 0.0
    %265 = vmatprep.subr.mxu0 0.0
    %266 = vmatpush2.xpose.msra.mxu0 0.0
    %267 = vmatprep.subr.mxu0 0.0
    %268 = vmatpush2.xpose.msra.mxu0 0.0
    %269 = vmatprep.subr.mxu0 0.0
    %270 = vmatpush2.xpose.msra.mxu0 0.0
    %271 = vmatprep.subr.mxu0 0.0
    %272 = vmatpush2.xpose.msra.mxu0 0.0
    %273 = vmatprep.subr.mxu0 0.0
    %274 = vmatpush2.xpose.msra.mxu0 0.0
    %275 = vmatprep.subr.mxu0 0.0
    %276 = vmatpush2.xpose.msra.mxu0 0.0
    %277 = vmatprep.subr.mxu0 0.0
    %278 = vmatpush2.xpose.msra.mxu0 0.0
    %279 = vmatprep.subr.mxu0 0.0
    %280 = vmatpush2.xpose.msra.mxu0 0.0
    %281 = vmatprep.subr.mxu0 0.0
    %282 = vmatpush2.xpose.msra.mxu0 0.0
    %283 = vmatprep.subr.mxu0 0.0
    %284 = vmatpush2.xpose.msra.mxu0 0.0
    %285 = vmatprep.mubr.f32.mxu0 0.0
    %286 = vmatmul.mubr.f32.gmra.mxu0 %v217
    %v287 = vpop.f32.mrf.mxu0
    %v288 = vadd.f32 0.0, %v287
    %v289 = vpop.f32.mrf.mxu0
    %290 = vdwg.mxu0
    %v291 = vmul.f32 %v288, 0.25
    %vm292 = vcmask 64512
    %v293 = vsel %vm292, %v291, -inf
    %294 = vmax.xlane.f32.xlu0 %v293
    %v295 = vpop.xlane.xlu0 %294
    %v296 = vsub.f32 %v291, %v295
    %v297 = vmul.f32 %v296, 1.442695
    %v298 = vpow.pop %v297
    %v299 = vsel %vm292, %v298, 0.0
    %300 = vadd.xlane.f32.xlu0 %v299
    %v301 = vpop.xlane.xlu0 %300
    %v302 = vrcp.pop %v301
    %v303 = vmul.f32 %v298, %v302
    %304 = vrot.lane.b32.xlu0 %v205, 64
    %v305 = vpop.permute.xlu0 %304
    %v308 = vsel %vm292, %v303, 0
    %310 = vmatprep.subr.mxu0 0.0
    %311 = vmatpush1.msra.mxu0 0.0
    %312 = vmatprep.subr.mxu0 0.0
    %313 = vmatpush1.msra.mxu0 0.0
    %314 = vmatprep.subr.mxu0 0.0
    %315 = vmatpush1.msra.mxu0 0.0
    %316 = vmatprep.subr.mxu0 0.0
    %317 = vmatpush1.msra.mxu0 0.0
    %318 = vmatprep.subr.mxu0 0.0
    %319 = vmatpush1.msra.mxu0 0.0
    %320 = vmatprep.subr.mxu0 0.0
    %321 = vmatpush1.msra.mxu0 0.0
    %322 = vmatprep.subr.mxu0 0.0
    %323 = vmatpush1.msra.mxu0 0.0
    %324 = vmatprep.subr.mxu0 0.0
    %325 = vmatpush1.msra.mxu0 0.0
    %326 = vmatprep.subr.mxu0 0.0
    %327 = vmatpush1.msra.mxu0 0.0
    %328 = vmatprep.subr.mxu0 0.0
    %329 = vmatpush1.msra.mxu0 0.0
    %330 = vmatprep.subr.mxu0 0.0
    %331 = vmatpush1.msra.mxu0 0.0
    %332 = vmatprep.subr.mxu0 0.0
    %333 = vmatpush1.msra.mxu0 0.0
    %334 = vmatprep.subr.mxu0 0.0
    %335 = vmatpush1.msra.mxu0 0.0
    %336 = vmatprep.subr.mxu0 0.0
    %337 = vmatpush1.msra.mxu0 0.0
    %338 = vmatprep.subr.mxu0 0.0
    %339 = vmatpush1.msra.mxu0 0.0
    %340 = vmatprep.subr.mxu0 0.0
    %341 = vmatpush1.msra.mxu0 %v305
    %342 = vmatprep.subr.mxu0 0.0
    %343 = vmatpush2.msra.mxu0 0.0
    %344 = vmatprep.subr.mxu0 0.0
    %345 = vmatpush2.msra.mxu0 0.0
    %346 = vmatprep.subr.mxu0 0.0
    %347 = vmatpush2.msra.mxu0 0.0
    %348 = vmatprep.subr.mxu0 0.0
    %349 = vmatpush2.msra.mxu0 0.0
    %350 = vmatprep.subr.mxu0 0.0
    %351 = vmatpush2.msra.mxu0 0.0
    %352 = vmatprep.subr.mxu0 0.0
    %353 = vmatpush2.msra.mxu0 0.0
    %354 = vmatprep.subr.mxu0 0.0
    %355 = vmatpush2.msra.mxu0 0.0
    %356 = vmatprep.subr.mxu0 0.0
    %357 = vmatpush2.msra.mxu0 0.0
    %358 = vmatprep.subr.mxu0 0.0
    %359 = vmatpush2.msra.mxu0 0.0
    %360 = vmatprep.subr.mxu0 0.0
    %361 = vmatpush2.msra.mxu0 0.0
    %362 = vmatprep.subr.mxu0 0.0
    %363 = vmatpush2.msra.mxu0 0.0
    %364 = vmatprep.subr.mxu0 0.0
    %365 = vmatpush2.msra.mxu0 0.0
    %366 = vmatprep.subr.mxu0 0.0
    %367 = vmatpush2.msra.mxu0 0.0
    %368 = vmatprep.subr.mxu0 0.0
    %369 = vmatpush2.msra.mxu0 0.0
    %370 = vmatprep.subr.mxu0 0.0
    %371 = vmatpush2.msra.mxu0 0.0
    %372 = vmatprep.subr.mxu0 0.0
    %373 = vmatpush2.msra.mxu0 0.0
    %374 = vmatprep.mubr.f32.mxu0 0.0
    %375 = vmatmul.mubr.f32.gmra.mxu0 %v308
    %v376 = vpop.f32.mrf.mxu0
    %v377 = vadd.f32 0.0, %v376
    %v378 = vpop.f32.mrf.mxu0
    %379 = vdwg.mxu0
    %380 = vrot.lane.b32.xlu0 %v205, 112
    %v381 = vpop.permute.xlu0 %380
    %382 = vrot.lane.b32.xlu0 %v205, 80
    %v383 = vpop.permute.xlu0 %382
    %v384 = vsel %vm216, %v381, 0
    %v386 = vsel %vm216, %v383, 0
    %388 = vmatprep.subr.mxu0 0.0
    %389 = vmatpush1.xpose.msra.mxu0 0.0
    %390 = vmatprep.subr.mxu0 0.0
    %391 = vmatpush1.xpose.msra.mxu0 0.0
    %392 = vmatprep.subr.mxu0 0.0
    %393 = vmatpush1.xpose.msra.mxu0 0.0
    %394 = vmatprep.subr.mxu0 0.0
    %395 = vmatpush1.xpose.msra.mxu0 0.0
    %396 = vmatprep.subr.mxu0 0.0
    %397 = vmatpush1.xpose.msra.mxu0 0.0
    %398 = vmatprep.subr.mxu0 0.0
    %399 = vmatpush1.xpose.msra.mxu0 0.0
    %400 = vmatprep.subr.mxu0 0.0
    %401 = vmatpush1.xpose.msra.mxu0 0.0
    %402 = vmatprep.subr.mxu0 0.0
    %403 = vmatpush1.xpose.msra.mxu0 0.0
    %404 = vmatprep.subr.mxu0 0.0
    %405 = vmatpush1.xpose.msra.mxu0 0.0
    %406 = vmatprep.subr.mxu0 0.0
    %407 = vmatpush1.xpose.msra.mxu0 0.0
    %408 = vmatprep.subr.mxu0 0.0
    %409 = vmatpush1.xpose.msra.mxu0 0.0
    %410 = vmatprep.subr.mxu0 0.0
    %411 = vmatpush1.xpose.msra.mxu0 0.0
    %412 = vmatprep.subr.mxu0 0.0
    %413 = vmatpush1.xpose.msra.mxu0 0.0
    %414 = vmatprep.subr.mxu0 0.0
    %415 = vmatpush1.xpose.msra.mxu0 0.0
    %416 = vmatprep.subr.mxu0 0.0
    %417 = vmatpush1.xpose.msra.mxu0 0.0
    %418 = vmatprep.subr.mxu0 0.0
    %419 = vmatpush1.xpose.msra.mxu0 %v386
    %420 = vmatprep.subr.mxu0 0.0
    %421 = vmatpush2.xpose.msra.mxu0 0.0
    %422 = vmatprep.subr.mxu0 0.0
    %423 = vmatpush2.xpose.msra.mxu0 0.0
    %424 = vmatprep.subr.mxu0 0.0
    %425 = vmatpush2.xpose.msra.mxu0 0.0
    %426 = vmatprep.subr.mxu0 0.0
    %427 = vmatpush2.xpose.msra.mxu0 0.0
    %428 = vmatprep.subr.mxu0 0.0
    %429 = vmatpush2.xpose.msra.mxu0 0.0
    %430 = vmatprep.subr.mxu0 0.0
    %431 = vmatpush2.xpose.msra.mxu0 0.0
    %432 = vmatprep.subr.mxu0 0.0
    %433 = vmatpush2.xpose.msra.mxu0 0.0
    %434 = vmatprep.subr.mxu0 0.0
    %435 = vmatpush2.xpose.msra.mxu0 0.0
    %436 = vmatprep.subr.mxu0 0.0
    %437 = vmatpush2.xpose.msra.mxu0 0.0
    %438 = vmatprep.subr.mxu0 0.0
    %439 = vmatpush2.xpose.msra.mxu0 0.0
    %440 = vmatprep.subr.mxu0 0.0
    %441 = vmatpush2.xpose.msra.mxu0 0.0
    %442 = vmatprep.subr.mxu0 0.0
    %443 = vmatpush2.xpose.msra.mxu0 0.0
    %444 = vmatprep.subr.mxu0 0.0
    %445 = vmatpush2.xpose.msra.mxu0 0.0
    %446 = vmatprep.subr.mxu0 0.0
    %447 = vmatpush2.xpose.msra.mxu0 0.0
    %448 = vmatprep.subr.mxu0 0.0
    %449 = vmatpush2.xpose.msra.mxu0 0.0
    %450 = vmatprep.subr.mxu0 0.0
    %451 = vmatpush2.xpose.msra.mxu0 0.0
    %452 = vmatprep.mubr.f32.mxu0 0.0
    %453 = vmatmul.mubr.f32.gmra.mxu0 %v384
    %v454 = vpop.f32.mrf.mxu0
    %v455 = vadd.f32 0.0, %v454
    %v456 = vpop.f32.mrf.mxu0
    %457 = vdwg.mxu0
    %v458 = vmul.f32 %v455, 0.25
    %v459 = vsel %vm292, %v458, -inf
    %460 = vmax.xlane.f32.xlu0 %v459
    %v461 = vpop.xlane.xlu0 %460
    %v462 = vsub.f32 %v458, %v461
    %v463 = vmul.f32 %v462, 1.442695
    %v464 = vpow.pop %v463
    %v465 = vsel %vm292, %v464, 0.0
    %466 = vadd.xlane.f32.xlu0 %v465
    %v467 = vpop.xlane.xlu0 %466
    %v468 = vrcp.pop %v467
    %v469 = vmul.f32 %v464, %v468
    %470 = vrot.lane.b32.xlu0 %v205, 48
    %v471 = vpop.permute.xlu0 %470
    %v474 = vsel %vm292, %v469, 0
    %476 = vmatprep.subr.mxu0 0.0
    %477 = vmatpush1.msra.mxu0 0.0
    %478 = vmatprep.subr.mxu0 0.0
    %479 = vmatpush1.msra.mxu0 0.0
    %480 = vmatprep.subr.mxu0 0.0
    %481 = vmatpush1.msra.mxu0 0.0
    %482 = vmatprep.subr.mxu0 0.0
    %483 = vmatpush1.msra.mxu0 0.0
    %484 = vmatprep.subr.mxu0 0.0
    %485 = vmatpush1.msra.mxu0 0.0
    %486 = vmatprep.subr.mxu0 0.0
    %487 = vmatpush1.msra.mxu0 0.0
    %488 = vmatprep.subr.mxu0 0.0
    %489 = vmatpush1.msra.mxu0 0.0
    %490 = vmatprep.subr.mxu0 0.0
    %491 = vmatpush1.msra.mxu0 0.0
    %492 = vmatprep.subr.mxu0 0.0
    %493 = vmatpush1.msra.mxu0 0.0
    %494 = vmatprep.subr.mxu0 0.0
    %495 = vmatpush1.msra.mxu0 0.0
    %496 = vmatprep.subr.mxu0 0.0
    %497 = vmatpush1.msra.mxu0 0.0
    %498 = vmatprep.subr.mxu0 0.0
    %499 = vmatpush1.msra.mxu0 0.0
    %500 = vmatprep.subr.mxu0 0.0
    %501 = vmatpush1.msra.mxu0 0.0
    %502 = vmatprep.subr.mxu0 0.0
    %503 = vmatpush1.msra.mxu0 0.0
    %504 = vmatprep.subr.mxu0 0.0
    %505 = vmatpush1.msra.mxu0 0.0
    %506 = vmatprep.subr.mxu0 0.0
    %507 = vmatpush1.msra.mxu0 %v471
    %508 = vmatprep.subr.mxu0 0.0
    %509 = vmatpush2.msra.mxu0 0.0
    %510 = vmatprep.subr.mxu0 0.0
    %511 = vmatpush2.msra.mxu0 0.0
    %512 = vmatprep.subr.mxu0 0.0
    %513 = vmatpush2.msra.mxu0 0.0
    %514 = vmatprep.subr.mxu0 0.0
    %515 = vmatpush2.msra.mxu0 0.0
    %516 = vmatprep.subr.mxu0 0.0
    %517 = vmatpush2.msra.mxu0 0.0
    %518 = vmatprep.subr.mxu0 0.0
    %519 = vmatpush2.msra.mxu0 0.0
    %520 = vmatprep.subr.mxu0 0.0
    %521 = vmatpush2.msra.mxu0 0.0
    %522 = vmatprep.subr.mxu0 0.0
    %523 = vmatpush2.msra.mxu0 0.0
    %524 = vmatprep.subr.mxu0 0.0
    %525 = vmatpush2.msra.mxu0 0.0
    %526 = vmatprep.subr.mxu0 0.0
    %527 = vmatpush2.msra.mxu0 0.0
    %528 = vmatprep.subr.mxu0 0.0
    %529 = vmatpush2.msra.mxu0 0.0
    %530 = vmatprep.subr.mxu0 0.0
    %531 = vmatpush2.msra.mxu0 0.0
    %532 = vmatprep.subr.mxu0 0.0
    %533 = vmatpush2.msra.mxu0 0.0
    %534 = vmatprep.subr.mxu0 0.0
    %535 = vmatpush2.msra.mxu0 0.0
    %536 = vmatprep.subr.mxu0 0.0
    %537 = vmatpush2.msra.mxu0 0.0
    %538 = vmatprep.subr.mxu0 0.0
    %539 = vmatpush2.msra.mxu0 0.0
    %540 = vmatprep.mubr.f32.mxu0 0.0
    %541 = vmatmul.mubr.f32.gmra.mxu0 %v474
    %v542 = vpop.f32.mrf.mxu0
    %v543 = vadd.f32 0.0, %v542
    %v544 = vpop.f32.mrf.mxu0
    %545 = vdwg.mxu0
    %547 = vrot.lane.b32.xlu0 %v543, 16
    %v548 = vpop.permute.xlu0 %547
    %v550 = vsel %vm216, %v377, %v548
    %552 = vrot.lane.b32.xlu0 %v210, 96
    %v553 = vpop.permute.xlu0 %552
    %v554 = vsel %vm216, %v210, 0
    %v556 = vsel %vm216, %v553, 0
    %558 = vmatprep.subr.mxu0 0.0
    %559 = vmatpush1.xpose.msra.mxu0 0.0
    %560 = vmatprep.subr.mxu0 0.0
    %561 = vmatpush1.xpose.msra.mxu0 0.0
    %562 = vmatprep.subr.mxu0 0.0
    %563 = vmatpush1.xpose.msra.mxu0 0.0
    %564 = vmatprep.subr.mxu0 0.0
    %565 = vmatpush1.xpose.msra.mxu0 0.0
    %566 = vmatprep.subr.mxu0 0.0
    %567 = vmatpush1.xpose.msra.mxu0 0.0
    %568 = vmatprep.subr.mxu0 0.0
    %569 = vmatpush1.xpose.msra.mxu0 0.0
    %570 = vmatprep.subr.mxu0 0.0
    %571 = vmatpush1.xpose.msra.mxu0 0.0
    %572 = vmatprep.subr.mxu0 0.0
    %573 = vmatpush1.xpose.msra.mxu0 0.0
    %574 = vmatprep.subr.mxu0 0.0
    %575 = vmatpush1.xpose.msra.mxu0 0.0
    %576 = vmatprep.subr.mxu0 0.0
    %577 = vmatpush1.xpose.msra.mxu0 0.0
    %578 = vmatprep.subr.mxu0 0.0
    %579 = vmatpush1.xpose.msra.mxu0 0.0
    %580 = vmatprep.subr.mxu0 0.0
    %581 = vmatpush1.xpose.msra.mxu0 0.0
    %582 = vmatprep.subr.mxu0 0.0
    %583 = vmatpush1.xpose.msra.mxu0 0.0
    %584 = vmatprep.subr.mxu0 0.0
    %585 = vmatpush1.xpose.msra.mxu0 0.0
    %586 = vmatprep.subr.mxu0 0.0
    %587 = vmatpush1.xpose.msra.mxu0 0.0
    %588 = vmatprep.subr.mxu0 0.0
    %589 = vmatpush1.xpose.msra.mxu0 %v556
    %590 = vmatprep.subr.mxu0 0.0
    %591 = vmatpush2.xpose.msra.mxu0 0.0
    %592 = vmatprep.subr.mxu0 0.0
    %593 = vmatpush2.xpose.msra.mxu0 0.0
    %594 = vmatprep.subr.mxu0 0.0
    %595 = vmatpush2.xpose.msra.mxu0 0.0
    %596 = vmatprep.subr.mxu0 0.0
    %597 = vmatpush2.xpose.msra.mxu0 0.0
    %598 = vmatprep.subr.mxu0 0.0
    %599 = vmatpush2.xpose.msra.mxu0 0.0
    %600 = vmatprep.subr.mxu0 0.0
    %601 = vmatpush2.xpose.msra.mxu0 0.0
    %602 = vmatprep.subr.mxu0 0.0
    %603 = vmatpush2.xpose.msra.mxu0 0.0
    %604 = vmatprep.subr.mxu0 0.0
    %605 = vmatpush2.xpose.msra.mxu0 0.0
    %606 = vmatprep.subr.mxu0 0.0
    %607 = vmatpush2.xpose.msra.mxu0 0.0
    %608 = vmatprep.subr.mxu0 0.0
    %609 = vmatpush2.xpose.msra.mxu0 0.0
    %610 = vmatprep.subr.mxu0 0.0
    %611 = vmatpush2.xpose.msra.mxu0 0.0
    %612 = vmatprep.subr.mxu0 0.0
    %613 = vmatpush2.xpose.msra.mxu0 0.0
    %614 = vmatprep.subr.mxu0 0.0
    %615 = vmatpush2.xpose.msra.mxu0 0.0
    %616 = vmatprep.subr.mxu0 0.0
    %617 = vmatpush2.xpose.msra.mxu0 0.0
    %618 = vmatprep.subr.mxu0 0.0
    %619 = vmatpush2.xpose.msra.mxu0 0.0
    %620 = vmatprep.subr.mxu0 0.0
    %621 = vmatpush2.xpose.msra.mxu0 0.0
    %622 = vmatprep.mubr.f32.mxu0 0.0
    %623 = vmatmul.mubr.f32.gmra.mxu0 %v554
    %v624 = vpop.f32.mrf.mxu0
    %v625 = vadd.f32 0.0, %v624
    %v626 = vpop.f32.mrf.mxu0
    %627 = vdwg.mxu0
    %v628 = vmul.f32 %v625, 0.25
    %v629 = vsel %vm292, %v628, -inf
    %630 = vmax.xlane.f32.xlu0 %v629
    %v631 = vpop.xlane.xlu0 %630
    %v632 = vsub.f32 %v628, %v631
    %v633 = vmul.f32 %v632, 1.442695
    %v634 = vpow.pop %v633
    %v635 = vsel %vm292, %v634, 0.0
    %636 = vadd.xlane.f32.xlu0 %v635
    %v637 = vpop.xlane.xlu0 %636
    %v638 = vrcp.pop %v637
    %v639 = vmul.f32 %v634, %v638
    %640 = vrot.lane.b32.xlu0 %v210, 64
    %v641 = vpop.permute.xlu0 %640
    %v644 = vsel %vm292, %v639, 0
    %646 = vmatprep.subr.mxu0 0.0
    %647 = vmatpush1.msra.mxu0 0.0
    %648 = vmatprep.subr.mxu0 0.0
    %649 = vmatpush1.msra.mxu0 0.0
    %650 = vmatprep.subr.mxu0 0.0
    %651 = vmatpush1.msra.mxu0 0.0
    %652 = vmatprep.subr.mxu0 0.0
    %653 = vmatpush1.msra.mxu0 0.0
    %654 = vmatprep.subr.mxu0 0.0
    %655 = vmatpush1.msra.mxu0 0.0
    %656 = vmatprep.subr.mxu0 0.0
    %657 = vmatpush1.msra.mxu0 0.0
    %658 = vmatprep.subr.mxu0 0.0
    %659 = vmatpush1.msra.mxu0 0.0
    %660 = vmatprep.subr.mxu0 0.0
    %661 = vmatpush1.msra.mxu0 0.0
    %662 = vmatprep.subr.mxu0 0.0
    %663 = vmatpush1.msra.mxu0 0.0
    %664 = vmatprep.subr.mxu0 0.0
    %665 = vmatpush1.msra.mxu0 0.0
    %666 = vmatprep.subr.mxu0 0.0
    %667 = vmatpush1.msra.mxu0 0.0
    %668 = vmatprep.subr.mxu0 0.0
    %669 = vmatpush1.msra.mxu0 0.0
    %670 = vmatprep.subr.mxu0 0.0
    %671 = vmatpush1.msra.mxu0 0.0
    %672 = vmatprep.subr.mxu0 0.0
    %673 = vmatpush1.msra.mxu0 0.0
    %674 = vmatprep.subr.mxu0 0.0
    %675 = vmatpush1.msra.mxu0 0.0
    %676 = vmatprep.subr.mxu0 0.0
    %677 = vmatpush1.msra.mxu0 %v641
    %678 = vmatprep.subr.mxu0 0.0
    %679 = vmatpush2.msra.mxu0 0.0
    %680 = vmatprep.subr.mxu0 0.0
    %681 = vmatpush2.msra.mxu0 0.0
    %682 = vmatprep.subr.mxu0 0.0
    %683 = vmatpush2.msra.mxu0 0.0
    %684 = vmatprep.subr.mxu0 0.0
    %685 = vmatpush2.msra.mxu0 0.0
    %686 = vmatprep.subr.mxu0 0.0
    %687 = vmatpush2.msra.mxu0 0.0
    %688 = vmatprep.subr.mxu0 0.0
    %689 = vmatpush2.msra.mxu0 0.0
    %690 = vmatprep.subr.mxu0 0.0
    %691 = vmatpush2.msra.mxu0 0.0
    %692 = vmatprep.subr.mxu0 0.0
    %693 = vmatpush2.msra.mxu0 0.0
    %694 = vmatprep.subr.mxu0 0.0
    %695 = vmatpush2.msra.mxu0 0.0
    %696 = vmatprep.subr.mxu0 0.0
    %697 = vmatpush2.msra.mxu0 0.0
    %698 = vmatprep.subr.mxu0 0.0
    %699 = vmatpush2.msra.mxu0 0.0
    %700 = vmatprep.subr.mxu0 0.0
    %701 = vmatpush2.msra.mxu0 0.0
    %702 = vmatprep.subr.mxu0 0.0
    %703 = vmatpush2.msra.mxu0 0.0
    %704 = vmatprep.subr.mxu0 0.0
    %705 = vmatpush2.msra.mxu0 0.0
    %706 = vmatprep.subr.mxu0 0.0
    %707 = vmatpush2.msra.mxu0 0.0
    %708 = vmatprep.subr.mxu0 0.0
    %709 = vmatpush2.msra.mxu0 0.0
    %710 = vmatprep.mubr.f32.mxu0 0.0
    %711 = vmatmul.mubr.f32.gmra.mxu0 %v644
    %v712 = vpop.f32.mrf.mxu0
    %v713 = vadd.f32 0.0, %v712
    %v714 = vpop.f32.mrf.mxu0
    %715 = vdwg.mxu0
    %716 = vrot.lane.b32.xlu0 %v210, 112
    %v717 = vpop.permute.xlu0 %716
    %718 = vrot.lane.b32.xlu0 %v210, 80
    %v719 = vpop.permute.xlu0 %718
    %v720 = vsel %vm216, %v717, 0
    %v722 = vsel %vm216, %v719, 0
    %724 = vmatprep.subr.mxu0 0.0
    %725 = vmatpush1.xpose.msra.mxu0 0.0
    %726 = vmatprep.subr.mxu0 0.0
    %727 = vmatpush1.xpose.msra.mxu0 0.0
    %728 = vmatprep.subr.mxu0 0.0
    %729 = vmatpush1.xpose.msra.mxu0 0.0
    %730 = vmatprep.subr.mxu0 0.0
    %731 = vmatpush1.xpose.msra.mxu0 0.0
    %732 = vmatprep.subr.mxu0 0.0
    %733 = vmatpush1.xpose.msra.mxu0 0.0
    %734 = vmatprep.subr.mxu0 0.0
    %735 = vmatpush1.xpose.msra.mxu0 0.0
    %736 = vmatprep.subr.mxu0 0.0
    %737 = vmatpush1.xpose.msra.mxu0 0.0
    %738 = vmatprep.subr.mxu0 0.0
    %739 = vmatpush1.xpose.msra.mxu0 0.0
    %740 = vmatprep.subr.mxu0 0.0
    %741 = vmatpush1.xpose.msra.mxu0 0.0
    %742 = vmatprep.subr.mxu0 0.0
    %743 = vmatpush1.xpose.msra.mxu0 0.0
    %744 = vmatprep.subr.mxu0 0.0
    %745 = vmatpush1.xpose.msra.mxu0 0.0
    %746 = vmatprep.subr.mxu0 0.0
    %747 = vmatpush1.xpose.msra.mxu0 0.0
    %748 = vmatprep.subr.mxu0 0.0
    %749 = vmatpush1.xpose.msra.mxu0 0.0
    %750 = vmatprep.subr.mxu0 0.0
    %751 = vmatpush1.xpose.msra.mxu0 0.0
    %752 = vmatprep.subr.mxu0 0.0
    %753 = vmatpush1.xpose.msra.mxu0 0.0
    %754 = vmatprep.subr.mxu0 0.0
    %755 = vmatpush1.xpose.msra.mxu0 %v722
    %756 = vmatprep.subr.mxu0 0.0
    %757 = vmatpush2.xpose.msra.mxu0 0.0
    %758 = vmatprep.subr.mxu0 0.0
    %759 = vmatpush2.xpose.msra.mxu0 0.0
    %760 = vmatprep.subr.mxu0 0.0
    %761 = vmatpush2.xpose.msra.mxu0 0.0
    %762 = vmatprep.subr.mxu0 0.0
    %763 = vmatpush2.xpose.msra.mxu0 0.0
    %764 = vmatprep.subr.mxu0 0.0
    %765 = vmatpush2.xpose.msra.mxu0 0.0
    %766 = vmatprep.subr.mxu0 0.0
    %767 = vmatpush2.xpose.msra.mxu0 0.0
    %768 = vmatprep.subr.mxu0 0.0
    %769 = vmatpush2.xpose.msra.mxu0 0.0
    %770 = vmatprep.subr.mxu0 0.0
    %771 = vmatpush2.xpose.msra.mxu0 0.0
    %772 = vmatprep.subr.mxu0 0.0
    %773 = vmatpush2.xpose.msra.mxu0 0.0
    %774 = vmatprep.subr.mxu0 0.0
    %775 = vmatpush2.xpose.msra.mxu0 0.0
    %776 = vmatprep.subr.mxu0 0.0
    %777 = vmatpush2.xpose.msra.mxu0 0.0
    %778 = vmatprep.subr.mxu0 0.0
    %779 = vmatpush2.xpose.msra.mxu0 0.0
    %780 = vmatprep.subr.mxu0 0.0
    %781 = vmatpush2.xpose.msra.mxu0 0.0
    %782 = vmatprep.subr.mxu0 0.0
    %783 = vmatpush2.xpose.msra.mxu0 0.0
    %784 = vmatprep.subr.mxu0 0.0
    %785 = vmatpush2.xpose.msra.mxu0 0.0
    %786 = vmatprep.subr.mxu0 0.0
    %787 = vmatpush2.xpose.msra.mxu0 0.0
    %788 = vmatprep.mubr.f32.mxu0 0.0
    %789 = vmatmul.mubr.f32.gmra.mxu0 %v720
    %v790 = vpop.f32.mrf.mxu0
    %v791 = vadd.f32 0.0, %v790
    %v792 = vpop.f32.mrf.mxu0
    %793 = vdwg.mxu0
    %v794 = vmul.f32 %v791, 0.25
    %v795 = vsel %vm292, %v794, -inf
    %796 = vmax.xlane.f32.xlu0 %v795
    %v797 = vpop.xlane.xlu0 %796
    %v798 = vsub.f32 %v794, %v797
    %v799 = vmul.f32 %v798, 1.442695
    %v800 = vpow.pop %v799
    %v801 = vsel %vm292, %v800, 0.0
    %802 = vadd.xlane.f32.xlu0 %v801
    %v803 = vpop.xlane.xlu0 %802
    %v804 = vrcp.pop %v803
    %v805 = vmul.f32 %v800, %v804
    %806 = vrot.lane.b32.xlu0 %v210, 48
    %v807 = vpop.permute.xlu0 %806
    %v810 = vsel %vm292, %v805, 0
    %812 = vmatprep.subr.mxu0 0.0
    %813 = vmatpush1.msra.mxu0 0.0
    %814 = vmatprep.subr.mxu0 0.0
    %815 = vmatpush1.msra.mxu0 0.0
    %816 = vmatprep.subr.mxu0 0.0
    %817 = vmatpush1.msra.mxu0 0.0
    %818 = vmatprep.subr.mxu0 0.0
    %819 = vmatpush1.msra.mxu0 0.0
    %820 = vmatprep.subr.mxu0 0.0
    %821 = vmatpush1.msra.mxu0 0.0
    %822 = vmatprep.subr.mxu0 0.0
    %823 = vmatpush1.msra.mxu0 0.0
    %824 = vmatprep.subr.mxu0 0.0
    %825 = vmatpush1.msra.mxu0 0.0
    %826 = vmatprep.subr.mxu0 0.0
    %827 = vmatpush1.msra.mxu0 0.0
    %828 = vmatprep.subr.mxu0 0.0
    %829 = vmatpush1.msra.mxu0 0.0
    %830 = vmatprep.subr.mxu0 0.0
    %831 = vmatpush1.msra.mxu0 0.0
    %832 = vmatprep.subr.mxu0 0.0
    %833 = vmatpush1.msra.mxu0 0.0
    %834 = vmatprep.subr.mxu0 0.0
    %835 = vmatpush1.msra.mxu0 0.0
    %836 = vmatprep.subr.mxu0 0.0
    %837 = vmatpush1.msra.mxu0 0.0
    %838 = vmatprep.subr.mxu0 0.0
    %839 = vmatpush1.msra.mxu0 0.0
    %840 = vmatprep.subr.mxu0 0.0
    %841 = vmatpush1.msra.mxu0 0.0
    %842 = vmatprep.subr.mxu0 0.0
    %843 = vmatpush1.msra.mxu0 %v807
    %844 = vmatprep.subr.mxu0 0.0
    %845 = vmatpush2.msra.mxu0 0.0
    %846 = vmatprep.subr.mxu0 0.0
    %847 = vmatpush2.msra.mxu0 0.0
    %848 = vmatprep.subr.mxu0 0.0
    %849 = vmatpush2.msra.mxu0 0.0
    %850 = vmatprep.subr.mxu0 0.0
    %851 = vmatpush2.msra.mxu0 0.0
    %852 = vmatprep.subr.mxu0 0.0
    %853 = vmatpush2.msra.mxu0 0.0
    %854 = vmatprep.subr.mxu0 0.0
    %855 = vmatpush2.msra.mxu0 0.0
    %856 = vmatprep.subr.mxu0 0.0
    %857 = vmatpush2.msra.mxu0 0.0
    %858 = vmatprep.subr.mxu0 0.0
    %859 = vmatpush2.msra.mxu0 0.0
    %860 = vmatprep.subr.mxu0 0.0
    %861 = vmatpush2.msra.mxu0 0.0
    %862 = vmatprep.subr.mxu0 0.0
    %863 = vmatpush2.msra.mxu0 0.0
    %864 = vmatprep.subr.mxu0 0.0
    %865 = vmatpush2.msra.mxu0 0.0
    %866 = vmatprep.subr.mxu0 0.0
    %867 = vmatpush2.msra.mxu0 0.0
    %868 = vmatprep.subr.mxu0 0.0
    %869 = vmatpush2.msra.mxu0 0.0
    %870 = vmatprep.subr.mxu0 0.0
    %871 = vmatpush2.msra.mxu0 0.0
    %872 = vmatprep.subr.mxu0 0.0
    %873 = vmatpush2.msra.mxu0 0.0
    %874 = vmatprep.subr.mxu0 0.0
    %875 = vmatpush2.msra.mxu0 0.0
    %876 = vmatprep.mubr.f32.mxu0 0.0
    %877 = vmatmul.mubr.f32.gmra.mxu0 %v810
    %v878 = vpop.f32.mrf.mxu0
    %v879 = vadd.f32 0.0, %v878
    %v880 = vpop.f32.mrf.mxu0
    %881 = vdwg.mxu0
    %883 = vrot.lane.b32.xlu0 %v879, 16
    %v884 = vpop.permute.xlu0 %883
    %v886 = vsel %vm216, %v713, %v884
    %v887 = vld [vmem:[%s4] sm:$0xff]
    %v888 = vld [vmem:[%s4 + $0x8] sm:$0xff]
    %v889 = vld [vmem:[%s4 + $0x10] sm:$0xff]
    %v890 = vld [vmem:[%s4 + $0x18] sm:$0xff]
    %v892 = vsel %vm84, %v550, 0
    %v895 = vsel %vm84, %v886, 0
    %897 = vmatprep.subr.mxu0 0.0
    %898 = vmatpush1.msra.mxu0 0.0
    %899 = vmatprep.subr.mxu0 0.0
    %900 = vmatpush1.msra.mxu0 0.0
    %901 = vmatprep.subr.mxu0 0.0
    %902 = vmatpush1.msra.mxu0 0.0
    %903 = vmatprep.subr.mxu0 0.0
    %904 = vmatpush1.msra.mxu0 0.0
    %905 = vmatprep.subr.mxu0 0.0
    %906 = vmatpush1.msra.mxu0 0.0
    %907 = vmatprep.subr.mxu0 0.0
    %908 = vmatpush1.msra.mxu0 0.0
    %909 = vmatprep.subr.mxu0 0.0
    %910 = vmatpush1.msra.mxu0 0.0
    %911 = vmatprep.subr.mxu0 0.0
    %912 = vmatpush1.msra.mxu0 0.0
    %913 = vmatprep.subr.mxu0 0.0
    %914 = vmatpush1.msra.mxu0 0.0
    %915 = vmatprep.subr.mxu0 0.0
    %916 = vmatpush1.msra.mxu0 0.0
    %917 = vmatprep.subr.mxu0 0.0
    %918 = vmatpush1.msra.mxu0 0.0
    %919 = vmatprep.subr.mxu0 0.0
    %920 = vmatpush1.msra.mxu0 0.0
    %921 = vmatprep.subr.mxu0 0.0
    %922 = vmatpush1.msra.mxu0 %v890
    %923 = vmatprep.subr.mxu0 0.0
    %924 = vmatpush1.msra.mxu0 %v889
    %925 = vmatprep.subr.mxu0 0.0
    %926 = vmatpush1.msra.mxu0 %v888
    %927 = vmatprep.subr.mxu0 0.0
    %928 = vmatpush1.msra.mxu0 %v887
    %929 = vmatprep.subr.mxu0 0.0
    %930 = vmatpush2.msra.mxu0 0.0
    %931 = vmatprep.subr.mxu0 0.0
    %932 = vmatpush2.msra.mxu0 0.0
    %933 = vmatprep.subr.mxu0 0.0
    %934 = vmatpush2.msra.mxu0 0.0
    %935 = vmatprep.subr.mxu0 0.0
    %936 = vmatpush2.msra.mxu0 0.0
    %937 = vmatprep.subr.mxu0 0.0
    %938 = vmatpush2.msra.mxu0 0.0
    %939 = vmatprep.subr.mxu0 0.0
    %940 = vmatpush2.msra.mxu0 0.0
    %941 = vmatprep.subr.mxu0 0.0
    %942 = vmatpush2.msra.mxu0 0.0
    %943 = vmatprep.subr.mxu0 0.0
    %944 = vmatpush2.msra.mxu0 0.0
    %945 = vmatprep.subr.mxu0 0.0
    %946 = vmatpush2.msra.mxu0 0.0
    %947 = vmatprep.subr.mxu0 0.0
    %948 = vmatpush2.msra.mxu0 0.0
    %949 = vmatprep.subr.mxu0 0.0
    %950 = vmatpush2.msra.mxu0 0.0
    %951 = vmatprep.subr.mxu0 0.0
    %952 = vmatpush2.msra.mxu0 0.0
    %953 = vmatprep.subr.mxu0 0.0
    %954 = vmatpush2.msra.mxu0 0.0
    %955 = vmatprep.subr.mxu0 0.0
    %956 = vmatpush2.msra.mxu0 0.0
    %957 = vmatprep.subr.mxu0 0.0
    %958 = vmatpush2.msra.mxu0 0.0
    %959 = vmatprep.subr.mxu0 0.0
    %960 = vmatpush2.msra.mxu0 0.0
    %961 = vmatprep.mubr.f32.mxu0 0.0
    %962 = vmatmul.mubr.f32.gmra.mxu0 %v892
    %v963 = vpop.f32.mrf.mxu0
    %v964 = vadd.f32 0.0, %v963
    %v965 = vpop.f32.mrf.mxu0
    %966 = vmatprep.mubr.f32.mxu0 0.0
    %967 = vmatmul.mubr.f32.gmra.mxu0 %v895
    %v968 = vpop.f32.mrf.mxu0
    %v969 = vadd.f32 0.0, %v968
    %v970 = vpop.f32.mrf.mxu0
    %971 = vdwg.mxu0
    %v972 = vadd.f32 %v80, %v964
    %v973 = vadd.f32 %v81, %v969
    %v974 = vld [vmem:[%s5] sm:$0x1]
    %v975 = vld [vmem:[%s6] sm:$0x1]
    %v976 = vsel %vm84, %v972, 0.0
    %977 = vadd.xlane.f32.xlu0 %v976
    %v978 = vpop.xlane.xlu0 %977
    %v979 = vsel %vm84, %v973, 0.0
    %980 = vadd.xlane.f32.xlu0 %v979
    %v981 = vpop.xlane.xlu0 %980
    %v982 = vmul.f32 %v978, %v91
    %v983 = vmul.f32 %v981, %v91
    %v984 = vsub.f32 %v972, %v982
    %v985 = vsub.f32 %v973, %v983
    %v986 = vmul.f32 %v984, %v984
    %v987 = vmul.f32 %v985, %v985
    %v988 = vsel %vm84, %v986, 0.0
    %989 = vadd.xlane.f32.xlu0 %v988
    %v990 = vpop.xlane.xlu0 %989
    %v991 = vsel %vm84, %v987, 0.0
    %992 = vadd.xlane.f32.xlu0 %v991
    %v993 = vpop.xlane.xlu0 %992
    %v994 = vmul.f32 %v990, %v91
    %v995 = vmul.f32 %v993, %v91
    %v996 = vadd.f32 %v994, 1e-05
    %v997 = vadd.f32 %v995, 1e-05
    %v998 = vrsqrt.pop %v996
    %v999 = vrsqrt.pop %v997
    %v1000 = vmul.f32 %v984, %v998
    %v1001 = vmul.f32 %v985, %v999
    %v1003 = vlaneseq
    %v1004 = vshrl.u32 %v1003, 7
    %v1005 = vsub.s32 0, %v1004
    %v1006 = vrot.slane %v974, %v1005
    %v1008 = vmul.f32 %v1000, %v1006
    %v1009 = vmul.f32 %v1001, %v1006
    %v1011 = vlaneseq
    %v1012 = vshrl.u32 %v1011, 7
    %v1013 = vsub.s32 0, %v1012
    %v1014 = vrot.slane %v975, %v1013
    %v1016 = vadd.f32 %v1008, %v1014
    %v1017 = vadd.f32 %v1009, %v1014
    %v1018 = vld [vmem:[%s7] sm:$0xff]
    %v1019 = vld [vmem:[%s7 + $0x8] sm:$0xff]
    %v1020 = vld [vmem:[%s7 + $0x10] sm:$0xff]
    %v1021 = vld [vmem:[%s7 + $0x18] sm:$0xff]
    %v1022 = vld [vmem:[#allocation5] sm:$0x1]
    %v1024 = vlaneseq
    %v1025 = vshrl.u32 %v1024, 7
    %v1026 = vsub.s32 0, %v1025
    %v1027 = vrot.slane %v1022, %v1026
    %v1030 = vsel %vm84, %v1016, 0
    %v1033 = vsel %vm84, %v1017, 0
    %1035 = vmatprep.subr.mxu0 0.0
    %1036 = vmatpush1.msra.mxu0 0.0
    %1037 = vmatprep.subr.mxu0 0.0
    %1038 = vmatpush1.msra.mxu0 0.0
    %1039 = vmatprep.subr.mxu0 0.0
    %1040 = vmatpush1.msra.mxu0 0.0
    %1041 = vmatprep.subr.mxu0 0.0
    %1042 = vmatpush1.msra.mxu0 0.0
    %1043 = vmatprep.subr.mxu0 0.0
    %1044 = vmatpush1.msra.mxu0 0.0
    %1045 = vmatprep.subr.mxu0 0.0
    %1046 = vmatpush1.msra.mxu0 0.0
    %1047 = vmatprep.subr.mxu0 0.0
    %1048 = vmatpush1.msra.mxu0 0.0
    %1049 = vmatprep.subr.mxu0 0.0
    %1050 = vmatpush1.msra.mxu0 0.0
    %1051 = vmatprep.subr.mxu0 0.0
    %1052 = vmatpush1.msra.mxu0 0.0
    %1053 = vmatprep.subr.mxu0 0.0
    %1054 = vmatpush1.msra.mxu0 0.0
    %1055 = vmatprep.subr.mxu0 0.0
    %1056 = vmatpush1.msra.mxu0 0.0
    %1057 = vmatprep.subr.mxu0 0.0
    %1058 = vmatpush1.msra.mxu0 0.0
    %1059 = vmatprep.subr.mxu0 0.0
    %1060 = vmatpush1.msra.mxu0 %v1021
    %1061 = vmatprep.subr.mxu0 0.0
    %1062 = vmatpush1.msra.mxu0 %v1020
    %1063 = vmatprep.subr.mxu0 0.0
    %1064 = vmatpush1.msra.mxu0 %v1019
    %1065 = vmatprep.subr.mxu0 0.0
    %1066 = vmatpush1.msra.mxu0 %v1018
    %1067 = vmatprep.subr.mxu0 0.0
    %1068 = vmatpush2.msra.mxu0 0.0
    %1069 = vmatprep.subr.mxu0 0.0
    %1070 = vmatpush2.msra.mxu0 0.0
    %1071 = vmatprep.subr.mxu0 0.0
    %1072 = vmatpush2.msra.mxu0 0.0
    %1073 = vmatprep.subr.mxu0 0.0
    %1074 = vmatpush2.msra.mxu0 0.0
    %1075 = vmatprep.subr.mxu0 0.0
    %1076 = vmatpush2.msra.mxu0 0.0
    %1077 = vmatprep.subr.mxu0 0.0
    %1078 = vmatpush2.msra.mxu0 0.0
    %1079 = vmatprep.subr.mxu0 0.0
    %1080 = vmatpush2.msra.mxu0 0.0
    %1081 = vmatprep.subr.mxu0 0.0
    %1082 = vmatpush2.msra.mxu0 0.0
    %1083 = vmatprep.subr.mxu0 0.0
    %1084 = vmatpush2.msra.mxu0 0.0
    %1085 = vmatprep.subr.mxu0 0.0
    %1086 = vmatpush2.msra.mxu0 0.0
    %1087 = vmatprep.subr.mxu0 0.0
    %1088 = vmatpush2.msra.mxu0 0.0
    %1089 = vmatprep.subr.mxu0 0.0
    %1090 = vmatpush2.msra.mxu0 0.0
    %1091 = vmatprep.subr.mxu0 0.0
    %1092 = vmatpush2.msra.mxu0 0.0
    %1093 = vmatprep.subr.mxu0 0.0
    %1094 = vmatpush2.msra.mxu0 0.0
    %1095 = vmatprep.subr.mxu0 0.0
    %1096 = vmatpush2.msra.mxu0 0.0
    %1097 = vmatprep.subr.mxu0 0.0
    %1098 = vmatpush2.msra.mxu0 0.0
    %1099 = vmatprep.mubr.f32.mxu0 0.0
    %1100 = vmatmul.mubr.f32.gmra.mxu0 %v1030
    %v1101 = vpop.f32.mrf.mxu0
    %v1102 = vadd.f32 %v1027, %v1101
    %v1103 = vpop.f32.mrf.mxu0
    %1104 = vmatprep.mubr.f32.mxu0 0.0
    %1105 = vmatmul.mubr.f32.gmra.mxu0 %v1033
    %v1106 = vpop.f32.mrf.mxu0
    %v1107 = vadd.f32 %v1027, %v1106
    %v1108 = vpop.f32.mrf.mxu0
    %1109 = vdwg.mxu0
    %v1110 = vmul.f32 %v1102, 0.5
    %v1111 = vmul.f32 %v1107, 0.5
    %v1112 = vmul.f32 %v1102, 0.70710677
    %v1113 = vmul.f32 %v1107, 0.70710677
    %v1114 = verf.f32.pop %v1112
    %v1115 = verf.f32.pop %v1113
    %v1116 = vadd.f32 %v1114, 1.0
    %v1117 = vadd.f32 %v1115, 1.0
    %v1118 = vmul.f32 %v1110, %v1116
    %v1119 = vmul.f32 %v1111, %v1117
    %v1120 = vld [vmem:[%s9] sm:$0xff]
    %v1121 = vld [vmem:[%s9 + $0x8] sm:$0xff]
    %v1122 = vld [vmem:[%s9 + $0x10] sm:$0xff]
    %v1123 = vld [vmem:[%s9 + $0x18] sm:$0xff]
    %v1124 = vld [vmem:[%s9 + $0x20] sm:$0xff]
    %v1125 = vld [vmem:[%s9 + $0x28] sm:$0xff]
    %v1126 = vld [vmem:[%s9 + $0x30] sm:$0xff]
    %v1127 = vld [vmem:[%s9 + $0x38] sm:$0xff]
    %vm1128 = vcmask 523264
    %v1130 = vsel %vm1128, %v1118, 0
    %v1133 = vsel %vm1128, %v1119, 0
    %1135 = vmatprep.subr.mxu0 0.0
    %1136 = vmatpush1.msra.mxu0 0.0
    %1137 = vmatprep.subr.mxu0 0.0
    %1138 = vmatpush1.msra.mxu0 0.0
    %1139 = vmatprep.subr.mxu0 0.0
    %1140 = vmatpush1.msra.mxu0 0.0
    %1141 = vmatprep.subr.mxu0 0.0
    %1142 = vmatpush1.msra.mxu0 0.0
    %1143 = vmatprep.subr.mxu0 0.0
    %1144 = vmatpush1.msra.mxu0 0.0
    %1145 = vmatprep.subr.mxu0 0.0
    %1146 = vmatpush1.msra.mxu0 0.0
    %1147 = vmatprep.subr.mxu0 0.0
    %1148 = vmatpush1.msra.mxu0 0.0
    %1149 = vmatprep.subr.mxu0 0.0
    %1150 = vmatpush1.msra.mxu0 0.0
    %1151 = vmatprep.subr.mxu0 0.0
    %1152 = vmatpush1.msra.mxu0 %v1127
    %1153 = vmatprep.subr.mxu0 0.0
    %1154 = vmatpush1.msra.mxu0 %v1126
    %1155 = vmatprep.subr.mxu0 0.0
    %1156 = vmatpush1.msra.mxu0 %v1125
    %1157 = vmatprep.subr.mxu0 0.0
    %1158 = vmatpush1.msra.mxu0 %v1124
    %1159 = vmatprep.subr.mxu0 0.0
    %1160 = vmatpush1.msra.mxu0 %v1123
    %1161 = vmatprep.subr.mxu0 0.0
    %1162 = vmatpush1.msra.mxu0 %v1122
    %1163 = vmatprep.subr.mxu0 0.0
    %1164 = vmatpush1.msra.mxu0 %v1121
    %1165 = vmatprep.subr.mxu0 0.0
    %1166 = vmatpush1.msra.mxu0 %v1120
    %1167 = vmatprep.subr.mxu0 0.0
    %1168 = vmatpush2.msra.mxu0 0.0
    %1169 = vmatprep.subr.mxu0 0.0
    %1170 = vmatpush2.msra.mxu0 0.0
    %1171 = vmatprep.subr.mxu0 0.0
    %1172 = vmatpush2.msra.mxu0 0.0
    %1173 = vmatprep.subr.mxu0 0.0
    %1174 = vmatpush2.msra.mxu0 0.0
    %1175 = vmatprep.subr.mxu0 0.0
    %1176 = vmatpush2.msra.mxu0 0.0
    %1177 = vmatprep.subr.mxu0 0.0
    %1178 = vmatpush2.msra.mxu0 0.0
    %1179 = vmatprep.subr.mxu0 0.0
    %1180 = vmatpush2.msra.mxu0 0.0
    %1181 = vmatprep.subr.mxu0 0.0
    %1182 = vmatpush2.msra.mxu0 0.0
    %1183 = vmatprep.subr.mxu0 0.0
    %1184 = vmatpush2.msra.mxu0 0.0
    %1185 = vmatprep.subr.mxu0 0.0
    %1186 = vmatpush2.msra.mxu0 0.0
    %1187 = vmatprep.subr.mxu0 0.0
    %1188 = vmatpush2.msra.mxu0 0.0
    %1189 = vmatprep.subr.mxu0 0.0
    %1190 = vmatpush2.msra.mxu0 0.0
    %1191 = vmatprep.subr.mxu0 0.0
    %1192 = vmatpush2.msra.mxu0 0.0
    %1193 = vmatprep.subr.mxu0 0.0
    %1194 = vmatpush2.msra.mxu0 0.0
    %1195 = vmatprep.subr.mxu0 0.0
    %1196 = vmatpush2.msra.mxu0 0.0
    %1197 = vmatprep.subr.mxu0 0.0
    %1198 = vmatpush2.msra.mxu0 0.0
    %1199 = vmatprep.mubr.f32.mxu0 0.0
    %1200 = vmatmul.mubr.f32.gmra.mxu0 %v1130
    %v1201 = vpop.f32.mrf.mxu0
    %v1202 = vadd.f32 0.0, %v1201
    %v1203 = vpop.f32.mrf.mxu0
    %1204 = vmatprep.mubr.f32.mxu0 0.0
    %1205 = vmatmul.mubr.f32.gmra.mxu0 %v1133
    %v1206 = vpop.f32.mrf.mxu0
    %v1207 = vadd.f32 0.0, %v1206
    %v1208 = vpop.f32.mrf.mxu0
    %1209 = vdwg.mxu0
    %v1210 = vadd.f32 %v972, %v1202
    %v1211 = vadd.f32 %v973, %v1207
    %v1212 = vld [vmem:[#allocation7] sm:$0x1]
    %v1214 = vlaneseq
    %v1215 = vshrl.u32 %v1214, 7
    %v1216 = vsub.s32 0, %v1215
    %v1217 = vrot.slane %v1212, %v1216
    %v1219 = vadd.f32 %v1210, %v1217
    %v1220 = vadd.f32 %v1211, %v1217
    %s1221 = scalar_lea.vmem %s1, 1
    %v1222 = vld [vmem:[%s1221] sm:$0x1]
    %s1223 = scalar_lea.vmem %s2, 1
    %v1224 = vld [vmem:[%s1223] sm:$0x1]
    %v1225 = vsel %vm84, %v1219, 0.0
    %1226 = vadd.xlane.f32.xlu0 %v1225
    %v1227 = vpop.xlane.xlu0 %1226
    %v1228 = vsel %vm84, %v1220, 0.0
    %1229 = vadd.xlane.f32.xlu0 %v1228
    %v1230 = vpop.xlane.xlu0 %1229
    %v1231 = vmul.f32 %v1227, %v91
    %v1232 = vmul.f32 %v1230, %v91
    %v1233 = vsub.f32 %v1219, %v1231
    %v1234 = vsub.f32 %v1220, %v1232
    %v1235 = vmul.f32 %v1233, %v1233
    %v1236 = vmul.f32 %v1234, %v1234
    %v1237 = vsel %vm84, %v1235, 0.0
    %1238 = vadd.xlane.f32.xlu0 %v1237
    %v1239 = vpop.xlane.xlu0 %1238
    %v1240 = vsel %vm84, %v1236, 0.0
    %1241 = vadd.xlane.f32.xlu0 %v1240
    %v1242 = vpop.xlane.xlu0 %1241
    %v1243 = vmul.f32 %v1239, %v91
    %v1244 = vmul.f32 %v1242, %v91
    %v1245 = vadd.f32 %v1243, 1e-05
    %v1246 = vadd.f32 %v1244, 1e-05
    %v1247 = vrsqrt.pop %v1245
    %v1248 = vrsqrt.pop %v1246
    %v1249 = vmul.f32 %v1233, %v1247
    %v1250 = vmul.f32 %v1234, %v1248
    %v1252 = vlaneseq
    %v1253 = vshrl.u32 %v1252, 7
    %v1254 = vsub.s32 0, %v1253
    %v1255 = vrot.slane %v1222, %v1254
    %v1257 = vmul.f32 %v1249, %v1255
    %v1258 = vmul.f32 %v1250, %v1255
    %v1260 = vlaneseq
    %v1261 = vshrl.u32 %v1260, 7
    %v1262 = vsub.s32 0, %v1261
    %v1263 = vrot.slane %v1224, %v1262
    %v1265 = vadd.f32 %v1257, %v1263
    %v1266 = vadd.f32 %v1258, %v1263
    %s1267 = scalar_lea.vmem %s3, 32
    %v1268 = vld [vmem:[%s1267] sm:$0xff]
    %v1269 = vld [vmem:[%s1267 + $0x8] sm:$0xff]
    %v1270 = vld [vmem:[%s1267 + $0x10] sm:$0xff]
    %v1271 = vld [vmem:[%s1267 + $0x18] sm:$0xff]
    %v1273 = vsel %vm84, %v1265, 0
    %v1276 = vsel %vm84, %v1266, 0
    %1278 = vmatprep.subr.mxu0 0.0
    %1279 = vmatpush1.msra.mxu0 0.0
    %1280 = vmatprep.subr.mxu0 0.0
    %1281 = vmatpush1.msra.mxu0 0.0
    %1282 = vmatprep.subr.mxu0 0.0
    %1283 = vmatpush1.msra.mxu0 0.0
    %1284 = vmatprep.subr.mxu0 0.0
    %1285 = vmatpush1.msra.mxu0 0.0
    %1286 = vmatprep.subr.mxu0 0.0
    %1287 = vmatpush1.msra.mxu0 0.0
    %1288 = vmatprep.subr.mxu0 0.0
    %1289 = vmatpush1.msra.mxu0 0.0
    %1290 = vmatprep.subr.mxu0 0.0
    %1291 = vmatpush1.msra.mxu0 0.0
    %1292 = vmatprep.subr.mxu0 0.0
    %1293 = vmatpush1.msra.mxu0 0.0
    %1294 = vmatprep.subr.mxu0 0.0
    %1295 = vmatpush1.msra.mxu0 0.0
    %1296 = vmatprep.subr.mxu0 0.0
    %1297 = vmatpush1.msra.mxu0 0.0
    %1298 = vmatprep.subr.mxu0 0.0
    %1299 = vmatpush1.msra.mxu0 0.0
    %1300 = vmatprep.subr.mxu0 0.0
    %1301 = vmatpush1.msra.mxu0 0.0
    %1302 = vmatprep.subr.mxu0 0.0
    %1303 = vmatpush1.msra.mxu0 %v1271
    %1304 = vmatprep.subr.mxu0 0.0
    %1305 = vmatpush1.msra.mxu0 %v1270
    %1306 = vmatprep.subr.mxu0 0.0
    %1307 = vmatpush1.msra.mxu0 %v1269
    %1308 = vmatprep.subr.mxu0 0.0
    %1309 = vmatpush1.msra.mxu0 %v1268
    %1310 = vmatprep.subr.mxu0 0.0
    %1311 = vmatpush2.msra.mxu0 0.0
    %1312 = vmatprep.subr.mxu0 0.0
    %1313 = vmatpush2.msra.mxu0 0.0
    %1314 = vmatprep.subr.mxu0 0.0
    %1315 = vmatpush2.msra.mxu0 0.0
    %1316 = vmatprep.subr.mxu0 0.0
    %1317 = vmatpush2.msra.mxu0 0.0
    %1318 = vmatprep.subr.mxu0 0.0
    %1319 = vmatpush2.msra.mxu0 0.0
    %1320 = vmatprep.subr.mxu0 0.0
    %1321 = vmatpush2.msra.mxu0 0.0
    %1322 = vmatprep.subr.mxu0 0.0
    %1323 = vmatpush2.msra.mxu0 0.0
    %1324 = vmatprep.subr.mxu0 0.0
    %1325 = vmatpush2.msra.mxu0 0.0
    %1326 = vmatprep.subr.mxu0 0.0
    %1327 = vmatpush2.msra.mxu0 0.0
    %1328 = vmatprep.subr.mxu0 0.0
    %1329 = vmatpush2.msra.mxu0 0.0
    %1330 = vmatprep.subr.mxu0 0.0
    %1331 = vmatpush2.msra.mxu0 0.0
    %1332 = vmatprep.subr.mxu0 0.0
    %1333 = vmatpush2.msra.mxu0 0.0
    %1334 = vmatprep.subr.mxu0 0.0
    %1335 = vmatpush2.msra.mxu0 0.0
    %1336 = vmatprep.subr.mxu0 0.0
    %1337 = vmatpush2.msra.mxu0 0.0
    %1338 = vmatprep.subr.mxu0 0.0
    %1339 = vmatpush2.msra.mxu0 0.0
    %1340 = vmatprep.subr.mxu0 0.0
    %1341 = vmatpush2.msra.mxu0 0.0
    %1342 = vmatprep.mubr.f32.mxu0 0.0
    %1343 = vmatmul.mubr.f32.gmra.mxu0 %v1273
    %v1344 = vpop.f32.mrf.mxu0
    %v1345 = vadd.f32 0.0, %v1344
    %v1346 = vpop.f32.mrf.mxu0
    %1347 = vmatprep.mubr.f32.mxu0 0.0
    %1348 = vmatmul.mubr.f32.gmra.mxu0 %v1276
    %v1349 = vpop.f32.mrf.mxu0
    %v1350 = vadd.f32 0.0, %v1349
    %v1351 = vpop.f32.mrf.mxu0
    %1352 = vdwg.mxu0
    %1354 = vrot.lane.b32.xlu0 %v1345, 96
    %v1355 = vpop.permute.xlu0 %1354
    %v1356 = vsel %vm216, %v1345, 0
    %v1358 = vsel %vm216, %v1355, 0
    %1360 = vmatprep.subr.mxu0 0.0
    %1361 = vmatpush1.xpose.msra.mxu0 0.0
    %1362 = vmatprep.subr.mxu0 0.0
    %1363 = vmatpush1.xpose.msra.mxu0 0.0
    %1364 = vmatprep.subr.mxu0 0.0
    %1365 = vmatpush1.xpose.msra.mxu0 0.0
    %1366 = vmatprep.subr.mxu0 0.0
    %1367 = vmatpush1.xpose.msra.mxu0 0.0
    %1368 = vmatprep.subr.mxu0 0.0
    %1369 = vmatpush1.xpose.msra.mxu0 0.0
    %1370 = vmatprep.subr.mxu0 0.0
    %1371 = vmatpush1.xpose.msra.mxu0 0.0
    %1372 = vmatprep.subr.mxu0 0.0
    %1373 = vmatpush1.xpose.msra.mxu0 0.0
    %1374 = vmatprep.subr.mxu0 0.0
    %1375 = vmatpush1.xpose.msra.mxu0 0.0
    %1376 = vmatprep.subr.mxu0 0.0
    %1377 = vmatpush1.xpose.msra.mxu0 0.0
    %1378 = vmatprep.subr.mxu0 0.0
    %1379 = vmatpush1.xpose.msra.mxu0 0.0
    %1380 = vmatprep.subr.mxu0 0.0
    %1381 = vmatpush1.xpose.msra.mxu0 0.0
    %1382 = vmatprep.subr.mxu0 0.0
    %1383 = vmatpush1.xpose.msra.mxu0 0.0
    %1384 = vmatprep.subr.mxu0 0.0
    %1385 = vmatpush1.xpose.msra.mxu0 0.0
    %1386 = vmatprep.subr.mxu0 0.0
    %1387 = vmatpush1.xpose.msra.mxu0 0.0
    %1388 = vmatprep.subr.mxu0 0.0
    %1389 = vmatpush1.xpose.msra.mxu0 0.0
    %1390 = vmatprep.subr.mxu0 0.0
    %1391 = vmatpush1.xpose.msra.mxu0 %v1358
    %1392 = vmatprep.subr.mxu0 0.0
    %1393 = vmatpush2.xpose.msra.mxu0 0.0
    %1394 = vmatprep.subr.mxu0 0.0
    %1395 = vmatpush2.xpose.msra.mxu0 0.0
    %1396 = vmatprep.subr.mxu0 0.0
    %1397 = vmatpush2.xpose.msra.mxu0 0.0
    %1398 = vmatprep.subr.mxu0 0.0
    %1399 = vmatpush2.xpose.msra.mxu0 0.0
    %1400 = vmatprep.subr.mxu0 0.0
    %1401 = vmatpush2.xpose.msra.mxu0 0.0
    %1402 = vmatprep.subr.mxu0 0.0
    %1403 = vmatpush2.xpose.msra.mxu0 0.0
    %1404 = vmatprep.subr.mxu0 0.0
    %1405 = vmatpush2.xpose.msra.mxu0 0.0
    %1406 = vmatprep.subr.mxu0 0.0
    %1407 = vmatpush2.xpose.msra.mxu0 0.0
    %1408 = vmatprep.subr.mxu0 0.0
    %1409 = vmatpush2.xpose.msra.mxu0 0.0
    %1410 = vmatprep.subr.mxu0 0.0
    %1411 = vmatpush2.xpose.msra.mxu0 0.0
    %1412 = vmatprep.subr.mxu0 0.0
    %1413 = vmatpush2.xpose.msra.mxu0 0.0
    %1414 = vmatprep.subr.mxu0 0.0
    %1415 = vmatpush2.xpose.msra.mxu0 0.0
    %1416 = vmatprep.subr.mxu0 0.0
    %1417 = vmatpush2.xpose.msra.mxu0 0.0
    %1418 = vmatprep.subr.mxu0 0.0
    %1419 = vmatpush2.xpose.msra.mxu0 0.0
    %1420 = vmatprep.subr.mxu0 0.0
    %1421 = vmatpush2.xpose.msra.mxu0 0.0
    %1422 = vmatprep.subr.mxu0 0.0
    %1423 = vmatpush2.xpose.msra.mxu0 0.0
    %1424 = vmatprep.mubr.f32.mxu0 0.0
    %1425 = vmatmul.mubr.f32.gmra.mxu0 %v1356
    %v1426 = vpop.f32.mrf.mxu0
    %v1427 = vadd.f32 0.0, %v1426
    %v1428 = vpop.f32.mrf.mxu0
    %1429 = vdwg.mxu0
    %v1430 = vmul.f32 %v1427, 0.25
    %v1431 = vsel %vm292, %v1430, -inf
    %1432 = vmax.xlane.f32.xlu0 %v1431
    %v1433 = vpop.xlane.xlu0 %1432
    %v1434 = vsub.f32 %v1430, %v1433
    %v1435 = vmul.f32 %v1434, 1.442695
    %v1436 = vpow.pop %v1435
    %v1437 = vsel %vm292, %v1436, 0.0
    %1438 = vadd.xlane.f32.xlu0 %v1437
    %v1439 = vpop.xlane.xlu0 %1438
    %v1440 = vrcp.pop %v1439
    %v1441 = vmul.f32 %v1436, %v1440
    %1442 = vrot.lane.b32.xlu0 %v1345, 64
    %v1443 = vpop.permute.xlu0 %1442
    %v1446 = vsel %vm292, %v1441, 0
    %1448 = vmatprep.subr.mxu0 0.0
    %1449 = vmatpush1.msra.mxu0 0.0
    %1450 = vmatprep.subr.mxu0 0.0
    %1451 = vmatpush1.msra.mxu0 0.0
    %1452 = vmatprep.subr.mxu0 0.0
    %1453 = vmatpush1.msra.mxu0 0.0
    %1454 = vmatprep.subr.mxu0 0.0
    %1455 = vmatpush1.msra.mxu0 0.0
    %1456 = vmatprep.subr.mxu0 0.0
    %1457 = vmatpush1.msra.mxu0 0.0
    %1458 = vmatprep.subr.mxu0 0.0
    %1459 = vmatpush1.msra.mxu0 0.0
    %1460 = vmatprep.subr.mxu0 0.0
    %1461 = vmatpush1.msra.mxu0 0.0
    %1462 = vmatprep.subr.mxu0 0.0
    %1463 = vmatpush1.msra.mxu0 0.0
    %1464 = vmatprep.subr.mxu0 0.0
    %1465 = vmatpush1.msra.mxu0 0.0
    %1466 = vmatprep.subr.mxu0 0.0
    %1467 = vmatpush1.msra.mxu0 0.0
    %1468 = vmatprep.subr.mxu0 0.0
    %1469 = vmatpush1.msra.mxu0 0.0
    %1470 = vmatprep.subr.mxu0 0.0
    %1471 = vmatpush1.msra.mxu0 0.0
    %1472 = vmatprep.subr.mxu0 0.0
    %1473 = vmatpush1.msra.mxu0 0.0
    %1474 = vmatprep.subr.mxu0 0.0
    %1475 = vmatpush1.msra.mxu0 0.0
    %1476 = vmatprep.subr.mxu0 0.0
    %1477 = vmatpush1.msra.mxu0 0.0
    %1478 = vmatprep.subr.mxu0 0.0
    %1479 = vmatpush1.msra.mxu0 %v1443
    %1480 = vmatprep.subr.mxu0 0.0
    %1481 = vmatpush2.msra.mxu0 0.0
    %1482 = vmatprep.subr.mxu0 0.0
    %1483 = vmatpush2.msra.mxu0 0.0
    %1484 = vmatprep.subr.mxu0 0.0
    %1485 = vmatpush2.msra.mxu0 0.0
    %1486 = vmatprep.subr.mxu0 0.0
    %1487 = vmatpush2.msra.mxu0 0.0
    %1488 = vmatprep.subr.mxu0 0.0
    %1489 = vmatpush2.msra.mxu0 0.0
    %1490 = vmatprep.subr.mxu0 0.0
    %1491 = vmatpush2.msra.mxu0 0.0
    %1492 = vmatprep.subr.mxu0 0.0
    %1493 = vmatpush2.msra.mxu0 0.0
    %1494 = vmatprep.subr.mxu0 0.0
    %1495 = vmatpush2.msra.mxu0 0.0
    %1496 = vmatprep.subr.mxu0 0.0
    %1497 = vmatpush2.msra.mxu0 0.0
    %1498 = vmatprep.subr.mxu0 0.0
    %1499 = vmatpush2.msra.mxu0 0.0
    %1500 = vmatprep.subr.mxu0 0.0
    %1501 = vmatpush2.msra.mxu0 0.0
    %1502 = vmatprep.subr.mxu0 0.0
    %1503 = vmatpush2.msra.mxu0 0.0
    %1504 = vmatprep.subr.mxu0 0.0
    %1505 = vmatpush2.msra.mxu0 0.0
    %1506 = vmatprep.subr.mxu0 0.0
    %1507 = vmatpush2.msra.mxu0 0.0
    %1508 = vmatprep.subr.mxu0 0.0
    %1509 = vmatpush2.msra.mxu0 0.0
    %1510 = vmatprep.subr.mxu0 0.0
    %1511 = vmatpush2.msra.mxu0 0.0
    %1512 = vmatprep.mubr.f32.mxu0 0.0
    %1513 = vmatmul.mubr.f32.gmra.mxu0 %v1446
    %v1514 = vpop.f32.mrf.mxu0
    %v1515 = vadd.f32 0.0, %v1514
    %v1516 = vpop.f32.mrf.mxu0
    %1517 = vdwg.mxu0
    %1518 = vrot.lane.b32.xlu0 %v1345, 112
    %v1519 = vpop.permute.xlu0 %1518
    %1520 = vrot.lane.b32.xlu0 %v1345, 80
    %v1521 = vpop.permute.xlu0 %1520
    %v1522 = vsel %vm216, %v1519, 0
    %v1524 = vsel %vm216, %v1521, 0
    %1526 = vmatprep.subr.mxu0 0.0
    %1527 = vmatpush1.xpose.msra.mxu0 0.0
    %1528 = vmatprep.subr.mxu0 0.0
    %1529 = vmatpush1.xpose.msra.mxu0 0.0
    %1530 = vmatprep.subr.mxu0 0.0
    %1531 = vmatpush1.xpose.msra.mxu0 0.0
    %1532 = vmatprep.subr.mxu0 0.0
    %1533 = vmatpush1.xpose.msra.mxu0 0.0
    %1534 = vmatprep.subr.mxu0 0.0
    %1535 = vmatpush1.xpose.msra.mxu0 0.0
    %1536 = vmatprep.subr.mxu0 0.0
    %1537 = vmatpush1.xpose.msra.mxu0 0.0
    %1538 = vmatprep.subr.mxu0 0.0
    %1539 = vmatpush1.xpose.msra.mxu0 0.0
    %1540 = vmatprep.subr.mxu0 0.0
    %1541 = vmatpush1.xpose.msra.mxu0 0.0
    %1542 = vmatprep.subr.mxu0 0.0
    %1543 = vmatpush1.xpose.msra.mxu0 0.0
    %1544 = vmatprep.subr.mxu0 0.0
    %1545 = vmatpush1.xpose.msra.mxu0 0.0
    %1546 = vmatprep.subr.mxu0 0.0
    %1547 = vmatpush1.xpose.msra.mxu0 0.0
    %1548 = vmatprep.subr.mxu0 0.0
    %1549 = vmatpush1.xpose.msra.mxu0 0.0
    %1550 = vmatprep.subr.mxu0 0.0
    %1551 = vmatpush1.xpose.msra.mxu0 0.0
    %1552 = vmatprep.subr.mxu0 0.0
    %1553 = vmatpush1.xpose.msra.mxu0 0.0
    %1554 = vmatprep.subr.mxu0 0.0
    %1555 = vmatpush1.xpose.msra.mxu0 0.0
    %1556 = vmatprep.subr.mxu0 0.0
    %1557 = vmatpush1.xpose.msra.mxu0 %v1524
    %1558 = vmatprep.subr.mxu0 0.0
    %1559 = vmatpush2.xpose.msra.mxu0 0.0
    %1560 = vmatprep.subr.mxu0 0.0
    %1561 = vmatpush2.xpose.msra.mxu0 0.0
    %1562 = vmatprep.subr.mxu0 0.0
    %1563 = vmatpush2.xpose.msra.mxu0 0.0
    %1564 = vmatprep.subr.mxu0 0.0
    %1565 = vmatpush2.xpose.msra.mxu0 0.0
    %1566 = vmatprep.subr.mxu0 0.0
    %1567 = vmatpush2.xpose.msra.mxu0 0.0
    %1568 = vmatprep.subr.mxu0 0.0
    %1569 = vmatpush2.xpose.msra.mxu0 0.0
    %1570 = vmatprep.subr.mxu0 0.0
    %1571 = vmatpush2.xpose.msra.mxu0 0.0
    %1572 = vmatprep.subr.mxu0 0.0
    %1573 = vmatpush2.xpose.msra.mxu0 0.0
    %1574 = vmatprep.subr.mxu0 0.0
    %1575 = vmatpush2.xpose.msra.mxu0 0.0
    %1576 = vmatprep.subr.mxu0 0.0
    %1577 = vmatpush2.xpose.msra.mxu0 0.0
    %1578 = vmatprep.subr.mxu0 0.0
    %1579 = vmatpush2.xpose.msra.mxu0 0.0
    %1580 = vmatprep.subr.mxu0 0.0
    %1581 = vmatpush2.xpose.msra.mxu0 0.0
    %1582 = vmatprep.subr.mxu0 0.0
    %1583 = vmatpush2.xpose.msra.mxu0 0.0
    %1584 = vmatprep.subr.mxu0 0.0
    %1585 = vmatpush2.xpose.msra.mxu0 0.0
    %1586 = vmatprep.subr.mxu0 0.0
    %1587 = vmatpush2.xpose.msra.mxu0 0.0
    %1588 = vmatprep.subr.mxu0 0.0
    %1589 = vmatpush2.xpose.msra.mxu0 0.0
    %1590 = vmatprep.mubr.f32.mxu0 0.0
    %1591 = vmatmul.mubr.f32.gmra.mxu0 %v1522
    %v1592 = vpop.f32.mrf.mxu0
    %v1593 = vadd.f32 0.0, %v1592
    %v1594 = vpop.f32.mrf.mxu0
    %1595 = vdwg.mxu0
    %v1596 = vmul.f32 %v1593, 0.25
    %v1597 = vsel %vm292, %v1596, -inf
    %1598 = vmax.xlane.f32.xlu0 %v1597
    %v1599 = vpop.xlane.xlu0 %1598
    %v1600 = vsub.f32 %v1596, %v1599
    %v1601 = vmul.f32 %v1600, 1.442695
    %v1602 = vpow.pop %v1601
    %v1603 = vsel %vm292, %v1602, 0.0
    %1604 = vadd.xlane.f32.xlu0 %v1603
    %v1605 = vpop.xlane.xlu0 %1604
    %v1606 = vrcp.pop %v1605
    %v1607 = vmul.f32 %v1602, %v1606
    %1608 = vrot.lane.b32.xlu0 %v1345, 48
    %v1609 = vpop.permute.xlu0 %1608
    %v1612 = vsel %vm292, %v1607, 0
    %1614 = vmatprep.subr.mxu0 0.0
    %1615 = vmatpush1.msra.mxu0 0.0
    %1616 = vmatprep.subr.mxu0 0.0
    %1617 = vmatpush1.msra.mxu0 0.0
    %1618 = vmatprep.subr.mxu0 0.0
    %1619 = vmatpush1.msra.mxu0 0.0
    %1620 = vmatprep.subr.mxu0 0.0
    %1621 = vmatpush1.msra.mxu0 0.0
    %1622 = vmatprep.subr.mxu0 0.0
    %1623 = vmatpush1.msra.mxu0 0.0
    %1624 = vmatprep.subr.mxu0 0.0
    %1625 = vmatpush1.msra.mxu0 0.0
    %1626 = vmatprep.subr.mxu0 0.0
    %1627 = vmatpush1.msra.mxu0 0.0
    %1628 = vmatprep.subr.mxu0 0.0
    %1629 = vmatpush1.msra.mxu0 0.0
    %1630 = vmatprep.subr.mxu0 0.0
    %1631 = vmatpush1.msra.mxu0 0.0
    %1632 = vmatprep.subr.mxu0 0.0
    %1633 = vmatpush1.msra.mxu0 0.0
    %1634 = vmatprep.subr.mxu0 0.0
    %1635 = vmatpush1.msra.mxu0 0.0
    %1636 = vmatprep.subr.mxu0 0.0
    %1637 = vmatpush1.msra.mxu0 0.0
    %1638 = vmatprep.subr.mxu0 0.0
    %1639 = vmatpush1.msra.mxu0 0.0
    %1640 = vmatprep.subr.mxu0 0.0
    %1641 = vmatpush1.msra.mxu0 0.0
    %1642 = vmatprep.subr.mxu0 0.0
    %1643 = vmatpush1.msra.mxu0 0.0
    %1644 = vmatprep.subr.mxu0 0.0
    %1645 = vmatpush1.msra.mxu0 %v1609
    %1646 = vmatprep.subr.mxu0 0.0
    %1647 = vmatpush2.msra.mxu0 0.0
    %1648 = vmatprep.subr.mxu0 0.0
    %1649 = vmatpush2.msra.mxu0 0.0
    %1650 = vmatprep.subr.mxu0 0.0
    %1651 = vmatpush2.msra.mxu0 0.0
    %1652 = vmatprep.subr.mxu0 0.0
    %1653 = vmatpush2.msra.mxu0 0.0
    %1654 = vmatprep.subr.mxu0 0.0
    %1655 = vmatpush2.msra.mxu0 0.0
    %1656 = vmatprep.subr.mxu0 0.0
    %1657 = vmatpush2.msra.mxu0 0.0
    %1658 = vmatprep.subr.mxu0 0.0
    %1659 = vmatpush2.msra.mxu0 0.0
    %1660 = vmatprep.subr.mxu0 0.0
    %1661 = vmatpush2.msra.mxu0 0.0
    %1662 = vmatprep.subr.mxu0 0.0
    %1663 = vmatpush2.msra.mxu0 0.0
    %1664 = vmatprep.subr.mxu0 0.0
    %1665 = vmatpush2.msra.mxu0 0.0
    %1666 = vmatprep.subr.mxu0 0.0
    %1667 = vmatpush2.msra.mxu0 0.0
    %1668 = vmatprep.subr.mxu0 0.0
    %1669 = vmatpush2.msra.mxu0 0.0
    %1670 = vmatprep.subr.mxu0 0.0
    %1671 = vmatpush2.msra.mxu0 0.0
    %1672 = vmatprep.subr.mxu0 0.0
    %1673 = vmatpush2.msra.mxu0 0.0
    %1674 = vmatprep.subr.mxu0 0.0
    %1675 = vmatpush2.msra.mxu0 0.0
    %1676 = vmatprep.subr.mxu0 0.0
    %1677 = vmatpush2.msra.mxu0 0.0
    %1678 = vmatprep.mubr.f32.mxu0 0.0
    %1679 = vmatmul.mubr.f32.gmra.mxu0 %v1612
    %v1680 = vpop.f32.mrf.mxu0
    %v1681 = vadd.f32 0.0, %v1680
    %v1682 = vpop.f32.mrf.mxu0
    %1683 = vdwg.mxu0
    %1685 = vrot.lane.b32.xlu0 %v1681, 16
    %v1686 = vpop.permute.xlu0 %1685
    %v1688 = vsel %vm216, %v1515, %v1686
    %1690 = vrot.lane.b32.xlu0 %v1350, 96
    %v1691 = vpop.permute.xlu0 %1690
    %v1692 = vsel %vm216, %v1350, 0
    %v1694 = vsel %vm216, %v1691, 0
    %1696 = vmatprep.subr.mxu0 0.0
    %1697 = vmatpush1.xpose.msra.mxu0 0.0
    %1698 = vmatprep.subr.mxu0 0.0
    %1699 = vmatpush1.xpose.msra.mxu0 0.0
    %1700 = vmatprep.subr.mxu0 0.0
    %1701 = vmatpush1.xpose.msra.mxu0 0.0
    %1702 = vmatprep.subr.mxu0 0.0
    %1703 = vmatpush1.xpose.msra.mxu0 0.0
    %1704 = vmatprep.subr.mxu0 0.0
    %1705 = vmatpush1.xpose.msra.mxu0 0.0
    %1706 = vmatprep.subr.mxu0 0.0
    %1707 = vmatpush1.xpose.msra.mxu0 0.0
    %1708 = vmatprep.subr.mxu0 0.0
    %1709 = vmatpush1.xpose.msra.mxu0 0.0
    %1710 = vmatprep.subr.mxu0 0.0
    %1711 = vmatpush1.xpose.msra.mxu0 0.0
    %1712 = vmatprep.subr.mxu0 0.0
    %1713 = vmatpush1.xpose.msra.mxu0 0.0
    %1714 = vmatprep.subr.mxu0 0.0
    %1715 = vmatpush1.xpose.msra.mxu0 0.0
    %1716 = vmatprep.subr.mxu0 0.0
    %1717 = vmatpush1.xpose.msra.mxu0 0.0
    %1718 = vmatprep.subr.mxu0 0.0
    %1719 = vmatpush1.xpose.msra.mxu0 0.0
    %1720 = vmatprep.subr.mxu0 0.0
    %1721 = vmatpush1.xpose.msra.mxu0 0.0
    %1722 = vmatprep.subr.mxu0 0.0
    %1723 = vmatpush1.xpose.msra.mxu0 0.0
    %1724 = vmatprep.subr.mxu0 0.0
    %1725 = vmatpush1.xpose.msra.mxu0 0.0
    %1726 = vmatprep.subr.mxu0 0.0
    %1727 = vmatpush1.xpose.msra.mxu0 %v1694
    %1728 = vmatprep.subr.mxu0 0.0
    %1729 = vmatpush2.xpose.msra.mxu0 0.0
    %1730 = vmatprep.subr.mxu0 0.0
    %1731 = vmatpush2.xpose.msra.mxu0 0.0
    %1732 = vmatprep.subr.mxu0 0.0
    %1733 = vmatpush2.xpose.msra.mxu0 0.0
    %1734 = vmatprep.subr.mxu0 0.0
    %1735 = vmatpush2.xpose.msra.mxu0 0.0
    %1736 = vmatprep.subr.mxu0 0.0
    %1737 = vmatpush2.xpose.msra.mxu0 0.0
    %1738 = vmatprep.subr.mxu0 0.0
    %1739 = vmatpush2.xpose.msra.mxu0 0.0
    %1740 = vmatprep.subr.mxu0 0.0
    %1741 = vmatpush2.xpose.msra.mxu0 0.0
    %1742 = vmatprep.subr.mxu0 0.0
    %1743 = vmatpush2.xpose.msra.mxu0 0.0
    %1744 = vmatprep.subr.mxu0 0.0
    %1745 = vmatpush2.xpose.msra.mxu0 0.0
    %1746 = vmatprep.subr.mxu0 0.0
    %1747 = vmatpush2.xpose.msra.mxu0 0.0
    %1748 = vmatprep.subr.mxu0 0.0
    %1749 = vmatpush2.xpose.msra.mxu0 0.0
    %1750 = vmatprep.subr.mxu0 0.0
    %1751 = vmatpush2.xpose.msra.mxu0 0.0
    %1752 = vmatprep.subr.mxu0 0.0
    %1753 = vmatpush2.xpose.msra.mxu0 0.0
    %1754 = vmatprep.subr.mxu0 0.0
    %1755 = vmatpush2.xpose.msra.mxu0 0.0
    %1756 = vmatprep.subr.mxu0 0.0
    %1757 = vmatpush2.xpose.msra.mxu0 0.0
    %1758 = vmatprep.subr.mxu0 0.0
    %1759 = vmatpush2.xpose.msra.mxu0 0.0
    %1760 = vmatprep.mubr.f32.mxu0 0.0
    %1761 = vmatmul.mubr.f32.gmra.mxu0 %v1692
    %v1762 = vpop.f32.mrf.mxu0
    %v1763 = vadd.f32 0.0, %v1762
    %v1764 = vpop.f32.mrf.mxu0
    %1765 = vdwg.mxu0
    %v1766 = vmul.f32 %v1763, 0.25
    %v1767 = vsel %vm292, %v1766, -inf
    %1768 = vmax.xlane.f32.xlu0 %v1767
    %v1769 = vpop.xlane.xlu0 %1768
    %v1770 = vsub.f32 %v1766, %v1769
    %v1771 = vmul.f32 %v1770, 1.442695
    %v1772 = vpow.pop %v1771
    %v1773 = vsel %vm292, %v1772, 0.0
    %1774 = vadd.xlane.f32.xlu0 %v1773
    %v1775 = vpop.xlane.xlu0 %1774
    %v1776 = vrcp.pop %v1775
    %v1777 = vmul.f32 %v1772, %v1776
    %1778 = vrot.lane.b32.xlu0 %v1350, 64
    %v1779 = vpop.permute.xlu0 %1778
    %v1782 = vsel %vm292, %v1777, 0
    %1784 = vmatprep.subr.mxu0 0.0
    %1785 = vmatpush1.msra.mxu0 0.0
    %1786 = vmatprep.subr.mxu0 0.0
    %1787 = vmatpush1.msra.mxu0 0.0
    %1788 = vmatprep.subr.mxu0 0.0
    %1789 = vmatpush1.msra.mxu0 0.0
    %1790 = vmatprep.subr.mxu0 0.0
    %1791 = vmatpush1.msra.mxu0 0.0
    %1792 = vmatprep.subr.mxu0 0.0
    %1793 = vmatpush1.msra.mxu0 0.0
    %1794 = vmatprep.subr.mxu0 0.0
    %1795 = vmatpush1.msra.mxu0 0.0
    %1796 = vmatprep.subr.mxu0 0.0
    %1797 = vmatpush1.msra.mxu0 0.0
    %1798 = vmatprep.subr.mxu0 0.0
    %1799 = vmatpush1.msra.mxu0 0.0
    %1800 = vmatprep.subr.mxu0 0.0
    %1801 = vmatpush1.msra.mxu0 0.0
    %1802 = vmatprep.subr.mxu0 0.0
    %1803 = vmatpush1.msra.mxu0 0.0
    %1804 = vmatprep.subr.mxu0 0.0
    %1805 = vmatpush1.msra.mxu0 0.0
    %1806 = vmatprep.subr.mxu0 0.0
    %1807 = vmatpush1.msra.mxu0 0.0
    %1808 = vmatprep.subr.mxu0 0.0
    %1809 = vmatpush1.msra.mxu0 0.0
    %1810 = vmatprep.subr.mxu0 0.0
    %1811 = vmatpush1.msra.mxu0 0.0
    %1812 = vmatprep.subr.mxu0 0.0
    %1813 = vmatpush1.msra.mxu0 0.0
    %1814 = vmatprep.subr.mxu0 0.0
    %1815 = vmatpush1.msra.mxu0 %v1779
    %1816 = vmatprep.subr.mxu0 0.0
    %1817 = vmatpush2.msra.mxu0 0.0
    %1818 = vmatprep.subr.mxu0 0.0
    %1819 = vmatpush2.msra.mxu0 0.0
    %1820 = vmatprep.subr.mxu0 0.0
    %1821 = vmatpush2.msra.mxu0 0.0
    %1822 = vmatprep.subr.mxu0 0.0
    %1823 = vmatpush2.msra.mxu0 0.0
    %1824 = vmatprep.subr.mxu0 0.0
    %1825 = vmatpush2.msra.mxu0 0.0
    %1826 = vmatprep.subr.mxu0 0.0
    %1827 = vmatpush2.msra.mxu0 0.0
    %1828 = vmatprep.subr.mxu0 0.0
    %1829 = vmatpush2.msra.mxu0 0.0
    %1830 = vmatprep.subr.mxu0 0.0
    %1831 = vmatpush2.msra.mxu0 0.0
    %1832 = vmatprep.subr.mxu0 0.0
    %1833 = vmatpush2.msra.mxu0 0.0
    %1834 = vmatprep.subr.mxu0 0.0
    %1835 = vmatpush2.msra.mxu0 0.0
    %1836 = vmatprep.subr.mxu0 0.0
    %1837 = vmatpush2.msra.mxu0 0.0
    %1838 = vmatprep.subr.mxu0 0.0
    %1839 = vmatpush2.msra.mxu0 0.0
    %1840 = vmatprep.subr.mxu0 0.0
    %1841 = vmatpush2.msra.mxu0 0.0
    %1842 = vmatprep.subr.mxu0 0.0
    %1843 = vmatpush2.msra.mxu0 0.0
    %1844 = vmatprep.subr.mxu0 0.0
    %1845 = vmatpush2.msra.mxu0 0.0
    %1846 = vmatprep.subr.mxu0 0.0
    %1847 = vmatpush2.msra.mxu0 0.0
    %1848 = vmatprep.mubr.f32.mxu0 0.0
    %1849 = vmatmul.mubr.f32.gmra.mxu0 %v1782
    %v1850 = vpop.f32.mrf.mxu0
    %v1851 = vadd.f32 0.0, %v1850
    %v1852 = vpop.f32.mrf.mxu0
    %1853 = vdwg.mxu0
    %1854 = vrot.lane.b32.xlu0 %v1350, 112
    %v1855 = vpop.permute.xlu0 %1854
    %1856 = vrot.lane.b32.xlu0 %v1350, 80
    %v1857 = vpop.permute.xlu0 %1856
    %v1858 = vsel %vm216, %v1855, 0
    %v1860 = vsel %vm216, %v1857, 0
    %1862 = vmatprep.subr.mxu0 0.0
    %1863 = vmatpush1.xpose.msra.mxu0 0.0
    %1864 = vmatprep.subr.mxu0 0.0
    %1865 = vmatpush1.xpose.msra.mxu0 0.0
    %1866 = vmatprep.subr.mxu0 0.0
    %1867 = vmatpush1.xpose.msra.mxu0 0.0
    %1868 = vmatprep.subr.mxu0 0.0
    %1869 = vmatpush1.xpose.msra.mxu0 0.0
    %1870 = vmatprep.subr.mxu0 0.0
    %1871 = vmatpush1.xpose.msra.mxu0 0.0
    %1872 = vmatprep.subr.mxu0 0.0
    %1873 = vmatpush1.xpose.msra.mxu0 0.0
    %1874 = vmatprep.subr.mxu0 0.0
    %1875 = vmatpush1.xpose.msra.mxu0 0.0
    %1876 = vmatprep.subr.mxu0 0.0
    %1877 = vmatpush1.xpose.msra.mxu0 0.0
    %1878 = vmatprep.subr.mxu0 0.0
    %1879 = vmatpush1.xpose.msra.mxu0 0.0
    %1880 = vmatprep.subr.mxu0 0.0
    %1881 = vmatpush1.xpose.msra.mxu0 0.0
    %1882 = vmatprep.subr.mxu0 0.0
    %1883 = vmatpush1.xpose.msra.mxu0 0.0
    %1884 = vmatprep.subr.mxu0 0.0
    %1885 = vmatpush1.xpose.msra.mxu0 0.0
    %1886 = vmatprep.subr.mxu0 0.0
    %1887 = vmatpush1.xpose.msra.mxu0 0.0
    %1888 = vmatprep.subr.mxu0 0.0
    %1889 = vmatpush1.xpose.msra.mxu0 0.0
    %1890 = vmatprep.subr.mxu0 0.0
    %1891 = vmatpush1.xpose.msra.mxu0 0.0
    %1892 = vmatprep.subr.mxu0 0.0
    %1893 = vmatpush1.xpose.msra.mxu0 %v1860
    %1894 = vmatprep.subr.mxu0 0.0
    %1895 = vmatpush2.xpose.msra.mxu0 0.0
    %1896 = vmatprep.subr.mxu0 0.0
    %1897 = vmatpush2.xpose.msra.mxu0 0.0
    %1898 = vmatprep.subr.mxu0 0.0
    %1899 = vmatpush2.xpose.msra.mxu0 0.0
    %1900 = vmatprep.subr.mxu0 0.0
    %1901 = vmatpush2.xpose.msra.mxu0 0.0
    %1902 = vmatprep.subr.mxu0 0.0
    %1903 = vmatpush2.xpose.msra.mxu0 0.0
    %1904 = vmatprep.subr.mxu0 0.0
    %1905 = vmatpush2.xpose.msra.mxu0 0.0
    %1906 = vmatprep.subr.mxu0 0.0
    %1907 = vmatpush2.xpose.msra.mxu0 0.0
    %1908 = vmatprep.subr.mxu0 0.0
    %1909 = vmatpush2.xpose.msra.mxu0 0.0
    %1910 = vmatprep.subr.mxu0 0.0
    %1911 = vmatpush2.xpose.msra.mxu0 0.0
    %1912 = vmatprep.subr.mxu0 0.0
    %1913 = vmatpush2.xpose.msra.mxu0 0.0
    %1914 = vmatprep.subr.mxu0 0.0
    %1915 = vmatpush2.xpose.msra.mxu0 0.0
    %1916 = vmatprep.subr.mxu0 0.0
    %1917 = vmatpush2.xpose.msra.mxu0 0.0
    %1918 = vmatprep.subr.mxu0 0.0
    %1919 = vmatpush2.xpose.msra.mxu0 0.0
    %1920 = vmatprep.subr.mxu0 0.0
    %1921 = vmatpush2.xpose.msra.mxu0 0.0
    %1922 = vmatprep.subr.mxu0 0.0
    %1923 = vmatpush2.xpose.msra.mxu0 0.0
    %1924 = vmatprep.subr.mxu0 0.0
    %1925 = vmatpush2.xpose.msra.mxu0 0.0
    %1926 = vmatprep.mubr.f32.mxu0 0.0
    %1927 = vmatmul.mubr.f32.gmra.mxu0 %v1858
    %v1928 = vpop.f32.mrf.mxu0
    %v1929 = vadd.f32 0.0, %v1928
    %v1930 = vpop.f32.mrf.mxu0
    %1931 = vdwg.mxu0
    %v1932 = vmul.f32 %v1929, 0.25
    %v1933 = vsel %vm292, %v1932, -inf
    %1934 = vmax.xlane.f32.xlu0 %v1933
    %v1935 = vpop.xlane.xlu0 %1934
    %v1936 = vsub.f32 %v1932, %v1935
    %v1937 = vmul.f32 %v1936, 1.442695
    %v1938 = vpow.pop %v1937
    %v1939 = vsel %vm292, %v1938, 0.0
    %1940 = vadd.xlane.f32.xlu0 %v1939
    %v1941 = vpop.xlane.xlu0 %1940
    %v1942 = vrcp.pop %v1941
    %v1943 = vmul.f32 %v1938, %v1942
    %1944 = vrot.lane.b32.xlu0 %v1350, 48
    %v1945 = vpop.permute.xlu0 %1944
    %v1948 = vsel %vm292, %v1943, 0
    %1950 = vmatprep.subr.mxu0 0.0
    %1951 = vmatpush1.msra.mxu0 0.0
    %1952 = vmatprep.subr.mxu0 0.0
    %1953 = vmatpush1.msra.mxu0 0.0
    %1954 = vmatprep.subr.mxu0 0.0
    %1955 = vmatpush1.msra.mxu0 0.0
    %1956 = vmatprep.subr.mxu0 0.0
    %1957 = vmatpush1.msra.mxu0 0.0
    %1958 = vmatprep.subr.mxu0 0.0
    %1959 = vmatpush1.msra.mxu0 0.0
    %1960 = vmatprep.subr.mxu0 0.0
    %1961 = vmatpush1.msra.mxu0 0.0
    %1962 = vmatprep.subr.mxu0 0.0
    %1963 = vmatpush1.msra.mxu0 0.0
    %1964 = vmatprep.subr.mxu0 0.0
    %1965 = vmatpush1.msra.mxu0 0.0
    %1966 = vmatprep.subr.mxu0 0.0
    %1967 = vmatpush1.msra.mxu0 0.0
    %1968 = vmatprep.subr.mxu0 0.0
    %1969 = vmatpush1.msra.mxu0 0.0
    %1970 = vmatprep.subr.mxu0 0.0
    %1971 = vmatpush1.msra.mxu0 0.0
    %1972 = vmatprep.subr.mxu0 0.0
    %1973 = vmatpush1.msra.mxu0 0.0
    %1974 = vmatprep.subr.mxu0 0.0
    %1975 = vmatpush1.msra.mxu0 0.0
    %1976 = vmatprep.subr.mxu0 0.0
    %1977 = vmatpush1.msra.mxu0 0.0
    %1978 = vmatprep.subr.mxu0 0.0
    %1979 = vmatpush1.msra.mxu0 0.0
    %1980 = vmatprep.subr.mxu0 0.0
    %1981 = vmatpush1.msra.mxu0 %v1945
    %1982 = vmatprep.subr.mxu0 0.0
    %1983 = vmatpush2.msra.mxu0 0.0
    %1984 = vmatprep.subr.mxu0 0.0
    %1985 = vmatpush2.msra.mxu0 0.0
    %1986 = vmatprep.subr.mxu0 0.0
    %1987 = vmatpush2.msra.mxu0 0.0
    %1988 = vmatprep.subr.mxu0 0.0
    %1989 = vmatpush2.msra.mxu0 0.0
    %1990 = vmatprep.subr.mxu0 0.0
    %1991 = vmatpush2.msra.mxu0 0.0
    %1992 = vmatprep.subr.mxu0 0.0
    %1993 = vmatpush2.msra.mxu0 0.0
    %1994 = vmatprep.subr.mxu0 0.0
    %1995 = vmatpush2.msra.mxu0 0.0
    %1996 = vmatprep.subr.mxu0 0.0
    %1997 = vmatpush2.msra.mxu0 0.0
    %1998 = vmatprep.subr.mxu0 0.0
    %1999 = vmatpush2.msra.mxu0 0.0
    %2000 = vmatprep.subr.mxu0 0.0
    %2001 = vmatpush2.msra.mxu0 0.0
    %2002 = vmatprep.subr.mxu0 0.0
    %2003 = vmatpush2.msra.mxu0 0.0
    %2004 = vmatprep.subr.mxu0 0.0
    %2005 = vmatpush2.msra.mxu0 0.0
    %2006 = vmatprep.subr.mxu0 0.0
    %2007 = vmatpush2.msra.mxu0 0.0
    %2008 = vmatprep.subr.mxu0 0.0
    %2009 = vmatpush2.msra.mxu0 0.0
    %2010 = vmatprep.subr.mxu0 0.0
    %2011 = vmatpush2.msra.mxu0 0.0
    %2012 = vmatprep.subr.mxu0 0.0
    %2013 = vmatpush2.msra.mxu0 0.0
    %2014 = vmatprep.mubr.f32.mxu0 0.0
    %2015 = vmatmul.mubr.f32.gmra.mxu0 %v1948
    %v2016 = vpop.f32.mrf.mxu0
    %v2017 = vadd.f32 0.0, %v2016
    %v2018 = vpop.f32.mrf.mxu0
    %2019 = vdwg.mxu0
    %2021 = vrot.lane.b32.xlu0 %v2017, 16
    %v2022 = vpop.permute.xlu0 %2021
    %v2024 = vsel %vm216, %v1851, %v2022
    %s2025 = scalar_lea.vmem %s4, 32
    %v2026 = vld [vmem:[%s2025] sm:$0xff]
    %v2027 = vld [vmem:[%s2025 + $0x8] sm:$0xff]
    %v2028 = vld [vmem:[%s2025 + $0x10] sm:$0xff]
    %v2029 = vld [vmem:[%s2025 + $0x18] sm:$0xff]
    %v2031 = vsel %vm84, %v1688, 0
    %v2034 = vsel %vm84, %v2024, 0
    %2036 = vmatprep.subr.mxu0 0.0
    %2037 = vmatpush1.msra.mxu0 0.0
    %2038 = vmatprep.subr.mxu0 0.0
    %2039 = vmatpush1.msra.mxu0 0.0
    %2040 = vmatprep.subr.mxu0 0.0
    %2041 = vmatpush1.msra.mxu0 0.0
    %2042 = vmatprep.subr.mxu0 0.0
    %2043 = vmatpush1.msra.mxu0 0.0
    %2044 = vmatprep.subr.mxu0 0.0
    %2045 = vmatpush1.msra.mxu0 0.0
    %2046 = vmatprep.subr.mxu0 0.0
    %2047 = vmatpush1.msra.mxu0 0.0
    %2048 = vmatprep.subr.mxu0 0.0
    %2049 = vmatpush1.msra.mxu0 0.0
    %2050 = vmatprep.subr.mxu0 0.0
    %2051 = vmatpush1.msra.mxu0 0.0
    %2052 = vmatprep.subr.mxu0 0.0
    %2053 = vmatpush1.msra.mxu0 0.0
    %2054 = vmatprep.subr.mxu0 0.0
    %2055 = vmatpush1.msra.mxu0 0.0
    %2056 = vmatprep.subr.mxu0 0.0
    %2057 = vmatpush1.msra.mxu0 0.0
    %2058 = vmatprep.subr.mxu0 0.0
    %2059 = vmatpush1.msra.mxu0 0.0
    %2060 = vmatprep.subr.mxu0 0.0
    %2061 = vmatpush1.msra.mxu0 %v2029
    %2062 = vmatprep.subr.mxu0 0.0
    %2063 = vmatpush1.msra.mxu0 %v2028
    %2064 = vmatprep.subr.mxu0 0.0
    %2065 = vmatpush1.msra.mxu0 %v2027
    %2066 = vmatprep.subr.mxu0 0.0
    %2067 = vmatpush1.msra.mxu0 %v2026
    %2068 = vmatprep.subr.mxu0 0.0
    %2069 = vmatpush2.msra.mxu0 0.0
    %2070 = vmatprep.subr.mxu0 0.0
    %2071 = vmatpush2.msra.mxu0 0.0
    %2072 = vmatprep.subr.mxu0 0.0
    %2073 = vmatpush2.msra.mxu0 0.0
    %2074 = vmatprep.subr.mxu0 0.0
    %2075 = vmatpush2.msra.mxu0 0.0
    %2076 = vmatprep.subr.mxu0 0.0
    %2077 = vmatpush2.msra.mxu0 0.0
    %2078 = vmatprep.subr.mxu0 0.0
    %2079 = vmatpush2.msra.mxu0 0.0
    %2080 = vmatprep.subr.mxu0 0.0
    %2081 = vmatpush2.msra.mxu0 0.0
    %2082 = vmatprep.subr.mxu0 0.0
    %2083 = vmatpush2.msra.mxu0 0.0
    %2084 = vmatprep.subr.mxu0 0.0
    %2085 = vmatpush2.msra.mxu0 0.0
    %2086 = vmatprep.subr.mxu0 0.0
    %2087 = vmatpush2.msra.mxu0 0.0
    %2088 = vmatprep.subr.mxu0 0.0
    %2089 = vmatpush2.msra.mxu0 0.0
    %2090 = vmatprep.subr.mxu0 0.0
    %2091 = vmatpush2.msra.mxu0 0.0
    %2092 = vmatprep.subr.mxu0 0.0
    %2093 = vmatpush2.msra.mxu0 0.0
    %2094 = vmatprep.subr.mxu0 0.0
    %2095 = vmatpush2.msra.mxu0 0.0
    %2096 = vmatprep.subr.mxu0 0.0
    %2097 = vmatpush2.msra.mxu0 0.0
    %2098 = vmatprep.subr.mxu0 0.0
    %2099 = vmatpush2.msra.mxu0 0.0
    %2100 = vmatprep.mubr.f32.mxu0 0.0
    %2101 = vmatmul.mubr.f32.gmra.mxu0 %v2031
    %v2102 = vpop.f32.mrf.mxu0
    %v2103 = vadd.f32 0.0, %v2102
    %v2104 = vpop.f32.mrf.mxu0
    %2105 = vmatprep.mubr.f32.mxu0 0.0
    %2106 = vmatmul.mubr.f32.gmra.mxu0 %v2034
    %v2107 = vpop.f32.mrf.mxu0
    %v2108 = vadd.f32 0.0, %v2107
    %v2109 = vpop.f32.mrf.mxu0
    %2110 = vdwg.mxu0
    %v2111 = vadd.f32 %v1219, %v2103
    %v2112 = vadd.f32 %v1220, %v2108
    %s2113 = scalar_lea.vmem %s5, 1
    %v2114 = vld [vmem:[%s2113] sm:$0x1]
    %s2115 = scalar_lea.vmem %s6, 1
    %v2116 = vld [vmem:[%s2115] sm:$0x1]
    %v2117 = vsel %vm84, %v2111, 0.0
    %2118 = vadd.xlane.f32.xlu0 %v2117
    %v2119 = vpop.xlane.xlu0 %2118
    %v2120 = vsel %vm84, %v2112, 0.0
    %2121 = vadd.xlane.f32.xlu0 %v2120
    %v2122 = vpop.xlane.xlu0 %2121
    %v2123 = vmul.f32 %v2119, %v91
    %v2124 = vmul.f32 %v2122, %v91
    %v2125 = vsub.f32 %v2111, %v2123
    %v2126 = vsub.f32 %v2112, %v2124
    %v2127 = vmul.f32 %v2125, %v2125
    %v2128 = vmul.f32 %v2126, %v2126
    %v2129 = vsel %vm84, %v2127, 0.0
    %2130 = vadd.xlane.f32.xlu0 %v2129
    %v2131 = vpop.xlane.xlu0 %2130
    %v2132 = vsel %vm84, %v2128, 0.0
    %2133 = vadd.xlane.f32.xlu0 %v2132
    %v2134 = vpop.xlane.xlu0 %2133
    %v2135 = vmul.f32 %v2131, %v91
    %v2136 = vmul.f32 %v2134, %v91
    %v2137 = vadd.f32 %v2135, 1e-05
    %v2138 = vadd.f32 %v2136, 1e-05
    %v2139 = vrsqrt.pop %v2137
    %v2140 = vrsqrt.pop %v2138
    %v2141 = vmul.f32 %v2125, %v2139
    %v2142 = vmul.f32 %v2126, %v2140
    %v2144 = vlaneseq
    %v2145 = vshrl.u32 %v2144, 7
    %v2146 = vsub.s32 0, %v2145
    %v2147 = vrot.slane %v2114, %v2146
    %v2149 = vmul.f32 %v2141, %v2147
    %v2150 = vmul.f32 %v2142, %v2147
    %v2152 = vlaneseq
    %v2153 = vshrl.u32 %v2152, 7
    %v2154 = vsub.s32 0, %v2153
    %v2155 = vrot.slane %v2116, %v2154
    %v2157 = vadd.f32 %v2149, %v2155
    %v2158 = vadd.f32 %v2150, %v2155
    %s2159 = scalar_lea.vmem %s7, 32
    %v2160 = vld [vmem:[%s2159] sm:$0xff]
    %v2161 = vld [vmem:[%s2159 + $0x8] sm:$0xff]
    %v2162 = vld [vmem:[%s2159 + $0x10] sm:$0xff]
    %v2163 = vld [vmem:[%s2159 + $0x18] sm:$0xff]
    %s2164 = scalar_lea.vmem [#allocation5], 1
    %v2165 = vld [vmem:[%s2164] sm:$0x1]
    %v2167 = vlaneseq
    %v2168 = vshrl.u32 %v2167, 7
    %v2169 = vsub.s32 0, %v2168
    %v2170 = vrot.slane %v2165, %v2169
    %v2173 = vsel %vm84, %v2157, 0
    %v2176 = vsel %vm84, %v2158, 0
    %2178 = vmatprep.subr.mxu0 0.0
    %2179 = vmatpush1.msra.mxu0 0.0
    %2180 = vmatprep.subr.mxu0 0.0
    %2181 = vmatpush1.msra.mxu0 0.0
    %2182 = vmatprep.subr.mxu0 0.0
    %2183 = vmatpush1.msra.mxu0 0.0
    %2184 = vmatprep.subr.mxu0 0.0
    %2185 = vmatpush1.msra.mxu0 0.0
    %2186 = vmatprep.subr.mxu0 0.0
    %2187 = vmatpush1.msra.mxu0 0.0
    %2188 = vmatprep.subr.mxu0 0.0
    %2189 = vmatpush1.msra.mxu0 0.0
    %2190 = vmatprep.subr.mxu0 0.0
    %2191 = vmatpush1.msra.mxu0 0.0
    %2192 = vmatprep.subr.mxu0 0.0
    %2193 = vmatpush1.msra.mxu0 0.0
    %2194 = vmatprep.subr.mxu0 0.0
    %2195 = vmatpush1.msra.mxu0 0.0
    %2196 = vmatprep.subr.mxu0 0.0
    %2197 = vmatpush1.msra.mxu0 0.0
    %2198 = vmatprep.subr.mxu0 0.0
    %2199 = vmatpush1.msra.mxu0 0.0
    %2200 = vmatprep.subr.mxu0 0.0
    %2201 = vmatpush1.msra.mxu0 0.0
    %2202 = vmatprep.subr.mxu0 0.0
    %2203 = vmatpush1.msra.mxu0 %v2163
    %2204 = vmatprep.subr.mxu0 0.0
    %2205 = vmatpush1.msra.mxu0 %v2162
    %2206 = vmatprep.subr.mxu0 0.0
    %2207 = vmatpush1.msra.mxu0 %v2161
    %2208 = vmatprep.subr.mxu0 0.0
    %2209 = vmatpush1.msra.mxu0 %v2160
    %2210 = vmatprep.subr.mxu0 0.0
    %2211 = vmatpush2.msra.mxu0 0.0
    %2212 = vmatprep.subr.mxu0 0.0
    %2213 = vmatpush2.msra.mxu0 0.0
    %2214 = vmatprep.subr.mxu0 0.0
    %2215 = vmatpush2.msra.mxu0 0.0
    %2216 = vmatprep.subr.mxu0 0.0
    %2217 = vmatpush2.msra.mxu0 0.0
    %2218 = vmatprep.subr.mxu0 0.0
    %2219 = vmatpush2.msra.mxu0 0.0
    %2220 = vmatprep.subr.mxu0 0.0
    %2221 = vmatpush2.msra.mxu0 0.0
    %2222 = vmatprep.subr.mxu0 0.0
    %2223 = vmatpush2.msra.mxu0 0.0
    %2224 = vmatprep.subr.mxu0 0.0
    %2225 = vmatpush2.msra.mxu0 0.0
    %2226 = vmatprep.subr.mxu0 0.0
    %2227 = vmatpush2.msra.mxu0 0.0
    %2228 = vmatprep.subr.mxu0 0.0
    %2229 = vmatpush2.msra.mxu0 0.0
    %2230 = vmatprep.subr.mxu0 0.0
    %2231 = vmatpush2.msra.mxu0 0.0
    %2232 = vmatprep.subr.mxu0 0.0
    %2233 = vmatpush2.msra.mxu0 0.0
    %2234 = vmatprep.subr.mxu0 0.0
    %2235 = vmatpush2.msra.mxu0 0.0
    %2236 = vmatprep.subr.mxu0 0.0
    %2237 = vmatpush2.msra.mxu0 0.0
    %2238 = vmatprep.subr.mxu0 0.0
    %2239 = vmatpush2.msra.mxu0 0.0
    %2240 = vmatprep.subr.mxu0 0.0
    %2241 = vmatpush2.msra.mxu0 0.0
    %2242 = vmatprep.mubr.f32.mxu0 0.0
    %2243 = vmatmul.mubr.f32.gmra.mxu0 %v2173
    %v2244 = vpop.f32.mrf.mxu0
    %v2245 = vadd.f32 %v2170, %v2244
    %v2246 = vpop.f32.mrf.mxu0
    %2247 = vmatprep.mubr.f32.mxu0 0.0
    %2248 = vmatmul.mubr.f32.gmra.mxu0 %v2176
    %v2249 = vpop.f32.mrf.mxu0
    %v2250 = vadd.f32 %v2170, %v2249
    %v2251 = vpop.f32.mrf.mxu0
    %2252 = vdwg.mxu0
    %v2253 = vmul.f32 %v2245, 0.5
    %v2254 = vmul.f32 %v2250, 0.5
    %v2255 = vmul.f32 %v2245, 0.70710677
    %v2256 = vmul.f32 %v2250, 0.70710677
    %v2257 = verf.f32.pop %v2255
    %v2258 = verf.f32.pop %v2256
    %v2259 = vadd.f32 %v2257, 1.0
    %v2260 = vadd.f32 %v2258, 1.0
    %v2261 = vmul.f32 %v2253, %v2259
    %v2262 = vmul.f32 %v2254, %v2260
    %s2263 = scalar_lea.vmem %s9, 64
    %v2264 = vld [vmem:[%s2263] sm:$0xff]
    %v2265 = vld [vmem:[%s2263 + $0x8] sm:$0xff]
    %v2266 = vld [vmem:[%s2263 + $0x10] sm:$0xff]
    %v2267 = vld [vmem:[%s2263 + $0x18] sm:$0xff]
    %v2268 = vld [vmem:[%s2263 + $0x20] sm:$0xff]
    %v2269 = vld [vmem:[%s2263 + $0x28] sm:$0xff]
    %v2270 = vld [vmem:[%s2263 + $0x30] sm:$0xff]
    %v2271 = vld [vmem:[%s2263 + $0x38] sm:$0xff]
    %v2273 = vsel %vm1128, %v2261, 0
    %v2276 = vsel %vm1128, %v2262, 0
    %2278 = vmatprep.subr.mxu0 0.0
    %2279 = vmatpush1.msra.mxu0 0.0
    %2280 = vmatprep.subr.mxu0 0.0
    %2281 = vmatpush1.msra.mxu0 0.0
    %2282 = vmatprep.subr.mxu0 0.0
    %2283 = vmatpush1.msra.mxu0 0.0
    %2284 = vmatprep.subr.mxu0 0.0
    %2285 = vmatpush1.msra.mxu0 0.0
    %2286 = vmatprep.subr.mxu0 0.0
    %2287 = vmatpush1.msra.mxu0 0.0
    %2288 = vmatprep.subr.mxu0 0.0
    %2289 = vmatpush1.msra.mxu0 0.0
    %2290 = vmatprep.subr.mxu0 0.0
    %2291 = vmatpush1.msra.mxu0 0.0
    %2292 = vmatprep.subr.mxu0 0.0
    %2293 = vmatpush1.msra.mxu0 0.0
    %2294 = vmatprep.subr.mxu0 0.0
    %2295 = vmatpush1.msra.mxu0 %v2271
    %2296 = vmatprep.subr.mxu0 0.0
    %2297 = vmatpush1.msra.mxu0 %v2270
    %2298 = vmatprep.subr.mxu0 0.0
    %2299 = vmatpush1.msra.mxu0 %v2269
    %2300 = vmatprep.subr.mxu0 0.0
    %2301 = vmatpush1.msra.mxu0 %v2268
    %2302 = vmatprep.subr.mxu0 0.0
    %2303 = vmatpush1.msra.mxu0 %v2267
    %2304 = vmatprep.subr.mxu0 0.0
    %2305 = vmatpush1.msra.mxu0 %v2266
    %2306 = vmatprep.subr.mxu0 0.0
    %2307 = vmatpush1.msra.mxu0 %v2265
    %2308 = vmatprep.subr.mxu0 0.0
    %2309 = vmatpush1.msra.mxu0 %v2264
    %2310 = vmatprep.subr.mxu0 0.0
    %2311 = vmatpush2.msra.mxu0 0.0
    %2312 = vmatprep.subr.mxu0 0.0
    %2313 = vmatpush2.msra.mxu0 0.0
    %2314 = vmatprep.subr.mxu0 0.0
    %2315 = vmatpush2.msra.mxu0 0.0
    %2316 = vmatprep.subr.mxu0 0.0
    %2317 = vmatpush2.msra.mxu0 0.0
    %2318 = vmatprep.subr.mxu0 0.0
    %2319 = vmatpush2.msra.mxu0 0.0
    %2320 = vmatprep.subr.mxu0 0.0
    %2321 = vmatpush2.msra.mxu0 0.0
    %2322 = vmatprep.subr.mxu0 0.0
    %2323 = vmatpush2.msra.mxu0 0.0
    %2324 = vmatprep.subr.mxu0 0.0
    %2325 = vmatpush2.msra.mxu0 0.0
    %2326 = vmatprep.subr.mxu0 0.0
    %2327 = vmatpush2.msra.mxu0 0.0
    %2328 = vmatprep.subr.mxu0 0.0
    %2329 = vmatpush2.msra.mxu0 0.0
    %2330 = vmatprep.subr.mxu0 0.0
    %2331 = vmatpush2.msra.mxu0 0.0
    %2332 = vmatprep.subr.mxu0 0.0
    %2333 = vmatpush2.msra.mxu0 0.0
    %2334 = vmatprep.subr.mxu0 0.0
    %2335 = vmatpush2.msra.mxu0 0.0
    %2336 = vmatprep.subr.mxu0 0.0
    %2337 = vmatpush2.msra.mxu0 0.0
    %2338 = vmatprep.subr.mxu0 0.0
    %2339 = vmatpush2.msra.mxu0 0.0
    %2340 = vmatprep.subr.mxu0 0.0
    %2341 = vmatpush2.msra.mxu0 0.0
    %2342 = vmatprep.mubr.f32.mxu0 0.0
    %2343 = vmatmul.mubr.f32.gmra.mxu0 %v2273
    %v2344 = vpop.f32.mrf.mxu0
    %v2345 = vadd.f32 0.0, %v2344
    %v2346 = vpop.f32.mrf.mxu0
    %2347 = vmatprep.mubr.f32.mxu0 0.0
    %2348 = vmatmul.mubr.f32.gmra.mxu0 %v2276
    %v2349 = vpop.f32.mrf.mxu0
    %v2350 = vadd.f32 0.0, %v2349
    %v2351 = vpop.f32.mrf.mxu0
    %2352 = vdwg.mxu0
    %v2353 = vadd.f32 %v2111, %v2345
    %v2354 = vadd.f32 %v2112, %v2350
    %s2355 = scalar_lea.vmem [#allocation7], 1
    %v2356 = vld [vmem:[%s2355] sm:$0x1]
    %v2358 = vlaneseq
    %v2359 = vshrl.u32 %v2358, 7
    %v2360 = vsub.s32 0, %v2359
    %v2361 = vrot.slane %v2356, %v2360
    %v2363 = vadd.f32 %v2353, %v2361
    %v2364 = vadd.f32 %v2354, %v2361
    %2365 = vst.msk [vmem:[#allocation8] sm:$0xff] %vm84, %v2363
    %2366 = vst.msk [vmem:[#allocation8 + $0x8] sm:$0xff] %vm84, %v2364
    // Predicated region
    $region58: #{transformer_forward.1} parent=1 // pred_check
      _
    $region59: #{transformer_forward.1} parent=1 // pred_check_branch
      %2368 = sbr.rel (0) target = $region61
    $region60: #{transformer_forward.1} parent=1 // pred_region
      %s2370 = ssub.s32 256, 256
      %2371 = vsyncadd [#allocation4], %s2370
      %s2372 = sshll.u32 [#allocation8], 4
      %s2373 = int_to_ptr.vmem [resolvable:$true] %s2372
      %2378 = dma.vmem_to_hbm [thread:$0]  %s2373, 256, %s11, [#allocation4], 128, 128, 8
    $region61: #{transformer_forward.1} parent=1 // pred_fallthru
      _
    // Predicated region
    $region62: #{transformer_forward.1} parent=1 // pred_check
      _
    $region63: #{transformer_forward.1} parent=1 // pred_check_branch
      %2380 = sbr.rel (0) target = $region65
    $region64: #{transformer_forward.1} parent=1 // pred_region
      %2381 = dma.done [#allocation4], 256
    $region65: #{transformer_forward.1} parent=1 // pred_fallthru
      _
    %2382 = vsyncpa [#allocation3], 1
    %2383 = vsyncpa [#allocation6], 1
    %2384 = vsyncpa [#allocation4], 1

</llo_original>
